<compile_context>
chip_gen: v5e
topology: v5e:2x2
jax: 0.10.0
libtpu: 0.0.40
codegen_flags: <defaults>
</compile_context>

<pallas_src>
import jax
import jax.numpy as jnp
from jax import lax
from jax.experimental import pallas as pl
from jax.experimental.pallas import tpu as pltpu

HIDDEN_SIZE = 16
INPUT_SIZE = 1
NUM_CLASSES = 69
NUM_LAYERS = 2          # hard-coded as two explicit layers in the kernel

_LANE = 128
_SUBLANE = 8


def _round_up(n, m):
    return (n + m - 1) // m * m


def _lstm_kernel(x_ref,        # (T, TB, I)   time-major input tile
                 wih0_ref,     # (I, 4H)      layer-0 input weights (gate-permuted)
                 b0_ref,       # (1, 4H)      layer-0 combined bias (b_ih + b_hh)
                 whh0_ref,     # (H, 4H)      layer-0 recurrent weights
                 w1_ref,       # (2H, 4H)     layer-1 fused [W_ih1; W_hh1]
                 b1_ref,       # (1, 4H)      layer-1 combined bias
                 wfc_ref,      # (H, Cp)      fc weights, zero-padded to lane width
                 bfc_ref,      # (1, Cp)
                 out_ref,      # (TB, Cp)
                 xproj_ref):   # VMEM scratch (T, TB, 4H)
    T, TB, I = x_ref.shape
    H = whh0_ref.shape[0]
    G = 4 * H

    # ---- Hoisted, time-independent work -------------------------------------------
    xg = x_ref[...]                                    # (T, TB, I)
    wih0 = wih0_ref[...]                               # (I, 4H)
    if I == 1:
        # input_size == 1: x @ W_ih0 is a lane-broadcast multiply (no MXU push).
        xproj = xg * wih0[None] + b0_ref[...][None]
    else:
        xproj = (jnp.einsum("tbi,ig->tbg", xg, wih0,
                            preferred_element_type=jnp.float32)
                 + b0_ref[...][None])
    xproj_ref[...] = xproj                             # (T, TB, 4H)

    whh0 = whh0_ref[...]                               # (H, 4H)
    w1 = w1_ref[...]                                   # (2H, 4H)
    b1 = jnp.broadcast_to(b1_ref[...], (TB, G))        # broadcast once, not per step

    # Gate order is [i, f, o, g]: one sigmoid over 3H lanes + one tanh over H lanes.
    def apply_gates(gates, c_prev):
        sg = jax.nn.sigmoid(gates[:, :3 * H])
        g_g = jnp.tanh(gates[:, 3 * H:])
        i_g = sg[:, :H]
        f_g = sg[:, H:2 * H]
        o_g = sg[:, 2 * H:3 * H]
        c_new = f_g * c_prev + i_g * g_g
        h_new = o_g * jnp.tanh(c_new)
        return h_new, c_new

    def step(t, carry):
        h0, c0, h1, c1 = carry
        # Layer 0: input projection precomputed; only the recurrent dot remains.
        g0 = xproj_ref[t] + jnp.dot(h0, whh0, preferred_element_type=jnp.float32)
        h0n, c0n = apply_gates(g0, c0)
        # Layer 1: single fused dot on concat([h0n, h1]).
        g1 = jnp.dot(jnp.concatenate([h0n, h1], axis=1), w1,
                     preferred_element_type=jnp.float32) + b1
        h1n, c1n = apply_gates(g1, c1)
        return h0n, c0n, h1n, c1n

    zeros = jnp.zeros((TB, H), jnp.float32)
    _, _, h1_last, _ = lax.fori_loop(0, T, step, (zeros, zeros, zeros, zeros),
                                     unroll=True)

    # Final Linear on the last timestep of the top layer (lane-dense padded output).
    out_ref[...] = (jnp.dot(h1_last, wfc_ref[...],
                            preferred_element_type=jnp.float32)
                    + bfc_ref[...]).astype(out_ref.dtype)


def _replicated_spec(arr):
    nd = arr.ndim
    return pl.BlockSpec(arr.shape, lambda b, _nd=nd: (0,) * _nd)


@jax.jit
def lstm_model_forward(x, params):
    """x: (B, T, I) float32 -> (B, NUM_CLASSES) float32."""
    B, T, I = x.shape
    H = HIDDEN_SIZE
    Cp = params["wfc_t"].shape[1]

    # Batch tile: multiple of 8 sublanes, capped at 128; pad batch to a full tile.
    TB = min(128, _round_up(B, _SUBLANE))
    Bp = _round_up(B, TB)

    x_tm = jnp.transpose(x, (1, 0, 2))                 # time-major (T, B, I)
    if Bp != B:
        x_tm = jnp.pad(x_tm, ((0, 0), (0, Bp - B), (0, 0)))

    grid = (Bp // TB,)
    in_specs = [
        pl.BlockSpec((T, TB, I), lambda b: (0, b, 0)),
        _replicated_spec(params["wih0_t"]),
        _replicated_spec(params["b0"]),
        _replicated_spec(params["whh0_t"]),
        _replicated_spec(params["w1"]),
        _replicated_spec(params["b1"]),
        _replicated_spec(params["wfc_t"]),
        _replicated_spec(params["bfc"]),
    ]
    out_specs = pl.BlockSpec((TB, Cp), lambda b: (b, 0))

    out_padded = pl.pallas_call(
        _lstm_kernel,
        out_shape=jax.ShapeDtypeStruct((Bp, Cp), jnp.float32),
        grid_spec=pltpu.PrefetchScalarGridSpec(
            num_scalar_prefetch=0,
            grid=grid,
            in_specs=in_specs,
            out_specs=out_specs,
            scratch_shapes=[pltpu.VMEM((T, TB, 4 * H), jnp.float32)],
        ),
        compiler_params=pltpu.CompilerParams(
            dimension_semantics=("parallel",)),
    )(x_tm, params["wih0_t"], params["b0"], params["whh0_t"],
      params["w1"], params["b1"], params["wfc_t"], params["bfc"])

    return out_padded[:B, :NUM_CLASSES]


def init_raw_params(key, input_size=INPUT_SIZE, hidden_size=HIDDEN_SIZE,
                    num_classes=NUM_CLASSES):
    """PyTorch-layout params; U(-1/sqrt(H), 1/sqrt(H)) like nn.LSTM / nn.Linear."""
    H = hidden_size
    bound = 1.0 / (H ** 0.5)
    ks = jax.random.split(key, 10)
    u = lambda k, shape: jax.random.uniform(k, shape, jnp.float32, -bound, bound)
    return {
        "w_ih0": u(ks[0], (4 * H, input_size)),
        "w_hh0": u(ks[1], (4 * H, H)),
        "b_ih0": u(ks[2], (4 * H,)),
        "b_hh0": u(ks[3], (4 * H,)),
        "w_ih1": u(ks[4], (4 * H, H)),
        "w_hh1": u(ks[5], (4 * H, H)),
        "b_ih1": u(ks[6], (4 * H,)),
        "b_hh1": u(ks[7], (4 * H,)),
        "w_fc": u(ks[8], (num_classes, H)),
        "b_fc": u(ks[9], (num_classes,)),
    }


def pack_params(raw, hidden_size=HIDDEN_SIZE, num_classes=NUM_CLASSES):
    """PyTorch layout -> kernel layout.

    - weights transposed, per-layer biases combined (b_ih + b_hh)
    - gate columns permuted [i, f, g, o] -> [i, f, o, g] (sigmoid gates contiguous)
    - layer-1 W_ih / W_hh stacked into one (2H, 4H) matrix for the fused per-step dot
    - fc weight/bias zero-padded to a lane-dense 128-column output
    """
    H = hidden_size
    perm = jnp.concatenate([jnp.arange(0, 2 * H),
                            jnp.arange(3 * H, 4 * H),
                            jnp.arange(2 * H, 3 * H)])
    pc = lambda w_t: w_t[:, perm]

    wih0_t = pc(raw["w_ih0"].T)                                     # (I, 4H)
    whh0_t = pc(raw["w_hh0"].T)                                     # (H, 4H)
    b0 = pc((raw["b_ih0"] + raw["b_hh0"])[None, :])                 # (1, 4H)
    w1 = pc(jnp.concatenate([raw["w_ih1"].T, raw["w_hh1"].T], 0))   # (2H, 4H)
    b1 = pc((raw["b_ih1"] + raw["b_hh1"])[None, :])                 # (1, 4H)

    C = num_classes
    Cp = _round_up(C, _LANE)
    wfc_t = jnp.zeros((H, Cp), jnp.float32).at[:, :C].set(raw["w_fc"].T)
    bfc = jnp.zeros((1, Cp), jnp.float32).at[:, :C].set(raw["b_fc"][None, :])

    # Note: recurrent weights could be cast to bf16 on v6e/v7x (f32 accumulation kept
    # via preferred_element_type); left in f32 here to keep the tight reference check.
    return {"wih0_t": wih0_t, "b0": b0, "whh0_t": whh0_t,
            "w1": w1, "b1": b1, "wfc_t": wfc_t, "bfc": bfc}


def _reference_forward(x, raw):
    """Pure-JAX reference with exact PyTorch LSTM semantics (gate order [i, f, g, o])."""
    B, T, _ = x.shape
    H = HIDDEN_SIZE

    def cell(x_t, h, c, w_ih, w_hh, b_ih, b_hh):
        g = x_t @ w_ih.T + h @ w_hh.T + b_ih + b_hh
        i = jax.nn.sigmoid(g[:, 0 * H:1 * H])
        f = jax.nn.sigmoid(g[:, 1 * H:2 * H])
        gg = jnp.tanh(g[:, 2 * H:3 * H])
        o = jax.nn.sigmoid(g[:, 3 * H:4 * H])
        c = f * c + i * gg
        return o * jnp.tanh(c), c

    h0 = c0 = h1 = c1 = jnp.zeros((B, H), jnp.float32)
    for t in range(T):
        h0, c0 = cell(x[:, t, :], h0, c0, raw["w_ih0"], raw["w_hh0"],
                      raw["b_ih0"], raw["b_hh0"])
        h1, c1 = cell(h0, h1, c1, raw["w_ih1"], raw["w_hh1"],
                      raw["b_ih1"], raw["b_hh1"])
    return h1 @ raw["w_fc"].T + raw["b_fc"]


if __name__ == "__main__":
    key = jax.random.PRNGKey(0)
    k_param, k_x = jax.random.split(key)

    batch, seq_len = 2, 8
    x = jax.random.normal(k_x, (batch, seq_len, INPUT_SIZE), jnp.float32)

    raw = init_raw_params(k_param)
    packed = pack_params(raw)

    out = lstm_model_forward(x, packed)
    out = jax.block_until_ready(out)

    ref = _reference_forward(x, raw)
    assert out.shape == (batch, NUM_CLASSES)
    assert jnp.allclose(out, ref, atol=1e-5, rtol=1e-5), "mismatch vs reference"

    print("KERNEL_OK")
</pallas_src>

<mosaic_0001>
module attributes {stable_mosaic.version = 11 : i64} {
  func.func @_lstm_kernel(%arg0: i32, %arg1: memref<8x8x1xf32, #tpu.memory_space<vmem>>, %arg2: memref<1x64xf32, #tpu.memory_space<vmem>>, %arg3: memref<1x64xf32, #tpu.memory_space<vmem>>, %arg4: memref<16x64xf32, #tpu.memory_space<vmem>>, %arg5: memref<32x64xf32, #tpu.memory_space<vmem>>, %arg6: memref<1x64xf32, #tpu.memory_space<vmem>>, %arg7: memref<16x128xf32, #tpu.memory_space<vmem>>, %arg8: memref<1x128xf32, #tpu.memory_space<vmem>>, %arg9: memref<8x128xf32, #tpu.memory_space<vmem>>, %arg10: memref<8x8x64xf32, #tpu.memory_space<vmem>>) attributes {dimension_semantics = [#tpu.dimension_semantics<parallel>], iteration_bounds = array<i64: 1>, scalar_prefetch = 0 : i64, scratch_operands = 1 : i64, tpu.core_type = #tpu.core_type<tc>, window_params = [{transform_indices = @transform_0, window_bounds = array<i64: 8, 8, 1>}, {pipeline_mode = #tpu.pipeline_mode<synchronous>, transform_indices = @transform_1, window_bounds = array<i64: 1, 64>}, {pipeline_mode = #tpu.pipeline_mode<synchronous>, transform_indices = @transform_2, window_bounds = array<i64: 1, 64>}, {pipeline_mode = #tpu.pipeline_mode<synchronous>, transform_indices = @transform_3, window_bounds = array<i64: 16, 64>}, {pipeline_mode = #tpu.pipeline_mode<synchronous>, transform_indices = @transform_4, window_bounds = array<i64: 32, 64>}, {pipeline_mode = #tpu.pipeline_mode<synchronous>, transform_indices = @transform_5, window_bounds = array<i64: 1, 64>}, {pipeline_mode = #tpu.pipeline_mode<synchronous>, transform_indices = @transform_6, window_bounds = array<i64: 16, 128>}, {pipeline_mode = #tpu.pipeline_mode<synchronous>, transform_indices = @transform_7, window_bounds = array<i64: 1, 128>}, {transform_indices = @transform_8, window_bounds = array<i64: 8, 128>}]} {
    %c0 = arith.constant 0 : index
    %c0_0 = arith.constant 0 : index
    %c0_1 = arith.constant 0 : index
    %0 = vector.load %arg1[%c0, %c0_0, %c0_1] : memref<8x8x1xf32, #tpu.memory_space<vmem>>, vector<8x8x1xf32>
    %c0_2 = arith.constant 0 : index
    %c0_3 = arith.constant 0 : index
    %1 = vector.load %arg2[%c0_2, %c0_3] : memref<1x64xf32, #tpu.memory_space<vmem>>, vector<1x64xf32>
    %2 = vector.shape_cast %1 : vector<1x64xf32> to vector<1x1x64xf32>
    %3 = vector.broadcast %0 : vector<8x8x1xf32> to vector<8x8x64xf32>
    %4 = vector.broadcast %2 : vector<1x1x64xf32> to vector<8x8x64xf32>
    %5 = arith.mulf %3, %4 : vector<8x8x64xf32>
    %c0_4 = arith.constant 0 : index
    %c0_5 = arith.constant 0 : index
    %6 = vector.load %arg3[%c0_4, %c0_5] : memref<1x64xf32, #tpu.memory_space<vmem>>, vector<1x64xf32>
    %7 = vector.shape_cast %6 : vector<1x64xf32> to vector<1x1x64xf32>
    %8 = vector.broadcast %7 : vector<1x1x64xf32> to vector<8x8x64xf32>
    %9 = arith.addf %5, %8 : vector<8x8x64xf32>
    %c0_6 = arith.constant 0 : index
    %c0_7 = arith.constant 0 : index
    %c0_8 = arith.constant 0 : index
    %10 = vector.load %arg10[%c0_6, %c0_7, %c0_8] : memref<8x8x64xf32, #tpu.memory_space<vmem>>, vector<8x8x64xf32>
    tpu.vector_store %arg10[%c0_6, %c0_7, %c0_8], %9 {strides = array<i32>} : memref<8x8x64xf32, #tpu.memory_space<vmem>>, vector<8x8x64xf32>,
    %c0_9 = arith.constant 0 : index
    %c0_10 = arith.constant 0 : index
    %11 = vector.load %arg4[%c0_9, %c0_10] : memref<16x64xf32, #tpu.memory_space<vmem>>, vector<16x64xf32>
    %c0_11 = arith.constant 0 : index
    %c0_12 = arith.constant 0 : index
    %12 = vector.load %arg5[%c0_11, %c0_12] : memref<32x64xf32, #tpu.memory_space<vmem>>, vector<32x64xf32>
    %c0_13 = arith.constant 0 : index
    %c0_14 = arith.constant 0 : index
    %13 = vector.load %arg6[%c0_13, %c0_14] : memref<1x64xf32, #tpu.memory_space<vmem>>, vector<1x64xf32>
    %14 = vector.shape_cast %13 : vector<1x64xf32> to vector<1x64xf32>
    %15 = vector.broadcast %14 : vector<1x64xf32> to vector<8x64xf32>
    %cst = arith.constant 0.000000e+00 : f32
    %16 = vector.broadcast %cst : f32 to vector<8x16xf32>
    %c0_i32 = arith.constant 0 : i32
    %17 = arith.index_cast %c0_i32 : i32 to index
    %c0_15 = arith.constant 0 : index
    %c0_16 = arith.constant 0 : index
    %18 = vector.load %arg10[%17, %c0_15, %c0_16] : memref<8x8x64xf32, #tpu.memory_space<vmem>>, vector<1x8x64xf32>
    %19 = vector.shape_cast %18 : vector<1x8x64xf32> to vector<8x64xf32>
    %cst_17 = arith.constant dense<0.000000e+00> : vector<8x64xf32>
    %20 = tpu.matmul %16, %11, %cst_17 {dimension_numbers = #tpu.dot_dimension_numbers<[1], [0], [0], [1], [0, 0, 1, 1], [], []>} : vector<8x16xf32>, vector<16x64xf32>, vector<8x64xf32> -> vector<8x64xf32>
    %21 = arith.addf %19, %20 : vector<8x64xf32>
    %22 = vector.extract_strided_slice %21 {offsets = [0, 0], sizes = [8, 48], strides = [1, 1]} : vector<8x64xf32> to vector<8x48xf32>
    %23 = arith.negf %22 : vector<8x48xf32>
    %24 = math.exp %23 : vector<8x48xf32>
    %cst_18 = arith.constant 1.000000e+00 : f32
    %25 = vector.broadcast %cst_18 : f32 to vector<8x48xf32>
    %26 = arith.addf %25, %24 : vector<8x48xf32>
    %27 = arith.divf %25, %26 : vector<8x48xf32>
    %28 = vector.extract_strided_slice %21 {offsets = [0, 48], sizes = [8, 16], strides = [1, 1]} : vector<8x64xf32> to vector<8x16xf32>
    %29 = math.tanh %28 : vector<8x16xf32>
    %30 = vector.extract_strided_slice %27 {offsets = [0, 0], sizes = [8, 16], strides = [1, 1]} : vector<8x48xf32> to vector<8x16xf32>
    %31 = vector.extract_strided_slice %27 {offsets = [0, 16], sizes = [8, 16], strides = [1, 1]} : vector<8x48xf32> to vector<8x16xf32>
    %32 = vector.extract_strided_slice %27 {offsets = [0, 32], sizes = [8, 16], strides = [1, 1]} : vector<8x48xf32> to vector<8x16xf32>
    %33 = arith.mulf %31, %16 : vector<8x16xf32>
    %34 = arith.mulf %30, %29 : vector<8x16xf32>
    %35 = arith.addf %33, %34 : vector<8x16xf32>
    %36 = math.tanh %35 : vector<8x16xf32>
    %37 = arith.mulf %32, %36 : vector<8x16xf32>
    %38 = tpu.concatenate %37, %16 in 1 : vector<8x16xf32>, vector<8x16xf32> -> vector<8x32xf32>
    %cst_19 = arith.constant dense<0.000000e+00> : vector<8x64xf32>
    %39 = tpu.matmul %38, %12, %cst_19 {dimension_numbers = #tpu.dot_dimension_numbers<[1], [0], [0], [1], [0, 0, 1, 1], [], []>} : vector<8x32xf32>, vector<32x64xf32>, vector<8x64xf32> -> vector<8x64xf32>
    %40 = arith.addf %39, %15 : vector<8x64xf32>
    %41 = vector.extract_strided_slice %40 {offsets = [0, 0], sizes = [8, 48], strides = [1, 1]} : vector<8x64xf32> to vector<8x48xf32>
    %42 = arith.negf %41 : vector<8x48xf32>
    %43 = math.exp %42 : vector<8x48xf32>
    %cst_20 = arith.constant 1.000000e+00 : f32
    %44 = vector.broadcast %cst_20 : f32 to vector<8x48xf32>
    %45 = arith.addf %44, %43 : vector<8x48xf32>
    %46 = arith.divf %44, %45 : vector<8x48xf32>
    %47 = vector.extract_strided_slice %40 {offsets = [0, 48], sizes = [8, 16], strides = [1, 1]} : vector<8x64xf32> to vector<8x16xf32>
    %48 = math.tanh %47 : vector<8x16xf32>
    %49 = vector.extract_strided_slice %46 {offsets = [0, 0], sizes = [8, 16], strides = [1, 1]} : vector<8x48xf32> to vector<8x16xf32>
    %50 = vector.extract_strided_slice %46 {offsets = [0, 16], sizes = [8, 16], strides = [1, 1]} : vector<8x48xf32> to vector<8x16xf32>
    %51 = vector.extract_strided_slice %46 {offsets = [0, 32], sizes = [8, 16], strides = [1, 1]} : vector<8x48xf32> to vector<8x16xf32>
    %52 = arith.mulf %50, %16 : vector<8x16xf32>
    %53 = arith.mulf %49, %48 : vector<8x16xf32>
    %54 = arith.addf %52, %53 : vector<8x16xf32>
    %55 = math.tanh %54 : vector<8x16xf32>
    %56 = arith.mulf %51, %55 : vector<8x16xf32>
    %c1_i32 = arith.constant 1 : i32
    %57 = arith.index_cast %c1_i32 : i32 to index
    %c0_21 = arith.constant 0 : index
    %c0_22 = arith.constant 0 : index
    %58 = vector.load %arg10[%57, %c0_21, %c0_22] : memref<8x8x64xf32, #tpu.memory_space<vmem>>, vector<1x8x64xf32>
    %59 = vector.shape_cast %58 : vector<1x8x64xf32> to vector<8x64xf32>
    %cst_23 = arith.constant dense<0.000000e+00> : vector<8x64xf32>
    %60 = tpu.matmul %37, %11, %cst_23 {dimension_numbers = #tpu.dot_dimension_numbers<[1], [0], [0], [1], [0, 0, 1, 1], [], []>} : vector<8x16xf32>, vector<16x64xf32>, vector<8x64xf32> -> vector<8x64xf32>
    %61 = arith.addf %59, %60 : vector<8x64xf32>
    %62 = vector.extract_strided_slice %61 {offsets = [0, 0], sizes = [8, 48], strides = [1, 1]} : vector<8x64xf32> to vector<8x48xf32>
    %63 = arith.negf %62 : vector<8x48xf32>
    %64 = math.exp %63 : vector<8x48xf32>
    %cst_24 = arith.constant 1.000000e+00 : f32
    %65 = vector.broadcast %cst_24 : f32 to vector<8x48xf32>
    %66 = arith.addf %65, %64 : vector<8x48xf32>
    %67 = arith.divf %65, %66 : vector<8x48xf32>
    %68 = vector.extract_strided_slice %61 {offsets = [0, 48], sizes = [8, 16], strides = [1, 1]} : vector<8x64xf32> to vector<8x16xf32>
    %69 = math.tanh %68 : vector<8x16xf32>
    %70 = vector.extract_strided_slice %67 {offsets = [0, 0], sizes = [8, 16], strides = [1, 1]} : vector<8x48xf32> to vector<8x16xf32>
    %71 = vector.extract_strided_slice %67 {offsets = [0, 16], sizes = [8, 16], strides = [1, 1]} : vector<8x48xf32> to vector<8x16xf32>
    %72 = vector.extract_strided_slice %67 {offsets = [0, 32], sizes = [8, 16], strides = [1, 1]} : vector<8x48xf32> to vector<8x16xf32>
    %73 = arith.mulf %71, %35 : vector<8x16xf32>
    %74 = arith.mulf %70, %69 : vector<8x16xf32>
    %75 = arith.addf %73, %74 : vector<8x16xf32>
    %76 = math.tanh %75 : vector<8x16xf32>
    %77 = arith.mulf %72, %76 : vector<8x16xf32>
    %78 = tpu.concatenate %77, %56 in 1 : vector<8x16xf32>, vector<8x16xf32> -> vector<8x32xf32>
    %cst_25 = arith.constant dense<0.000000e+00> : vector<8x64xf32>
    %79 = tpu.matmul %78, %12, %cst_25 {dimension_numbers = #tpu.dot_dimension_numbers<[1], [0], [0], [1], [0, 0, 1, 1], [], []>} : vector<8x32xf32>, vector<32x64xf32>, vector<8x64xf32> -> vector<8x64xf32>
    %80 = arith.addf %79, %15 : vector<8x64xf32>
    %81 = vector.extract_strided_slice %80 {offsets = [0, 0], sizes = [8, 48], strides = [1, 1]} : vector<8x64xf32> to vector<8x48xf32>
    %82 = arith.negf %81 : vector<8x48xf32>
    %83 = math.exp %82 : vector<8x48xf32>
    %cst_26 = arith.constant 1.000000e+00 : f32
    %84 = vector.broadcast %cst_26 : f32 to vector<8x48xf32>
    %85 = arith.addf %84, %83 : vector<8x48xf32>
    %86 = arith.divf %84, %85 : vector<8x48xf32>
    %87 = vector.extract_strided_slice %80 {offsets = [0, 48], sizes = [8, 16], strides = [1, 1]} : vector<8x64xf32> to vector<8x16xf32>
    %88 = math.tanh %87 : vector<8x16xf32>
    %89 = vector.extract_strided_slice %86 {offsets = [0, 0], sizes = [8, 16], strides = [1, 1]} : vector<8x48xf32> to vector<8x16xf32>
    %90 = vector.extract_strided_slice %86 {offsets = [0, 16], sizes = [8, 16], strides = [1, 1]} : vector<8x48xf32> to vector<8x16xf32>
    %91 = vector.extract_strided_slice %86 {offsets = [0, 32], sizes = [8, 16], strides = [1, 1]} : vector<8x48xf32> to vector<8x16xf32>
    %92 = arith.mulf %90, %54 : vector<8x16xf32>
    %93 = arith.mulf %89, %88 : vector<8x16xf32>
    %94 = arith.addf %92, %93 : vector<8x16xf32>
    %95 = math.tanh %94 : vector<8x16xf32>
    %96 = arith.mulf %91, %95 : vector<8x16xf32>
    %c2_i32 = arith.constant 2 : i32
    %97 = arith.index_cast %c2_i32 : i32 to index
    %c0_27 = arith.constant 0 : index
    %c0_28 = arith.constant 0 : index
    %98 = vector.load %arg10[%97, %c0_27, %c0_28] : memref<8x8x64xf32, #tpu.memory_space<vmem>>, vector<1x8x64xf32>
    %99 = vector.shape_cast %98 : vector<1x8x64xf32> to vector<8x64xf32>
    %cst_29 = arith.constant dense<0.000000e+00> : vector<8x64xf32>
    %100 = tpu.matmul %77, %11, %cst_29 {dimension_numbers = #tpu.dot_dimension_numbers<[1], [0], [0], [1], [0, 0, 1, 1], [], []>} : vector<8x16xf32>, vector<16x64xf32>, vector<8x64xf32> -> vector<8x64xf32>
    %101 = arith.addf %99, %100 : vector<8x64xf32>
    %102 = vector.extract_strided_slice %101 {offsets = [0, 0], sizes = [8, 48], strides = [1, 1]} : vector<8x64xf32> to vector<8x48xf32>
    %103 = arith.negf %102 : vector<8x48xf32>
    %104 = math.exp %103 : vector<8x48xf32>
    %cst_30 = arith.constant 1.000000e+00 : f32
    %105 = vector.broadcast %cst_30 : f32 to vector<8x48xf32>
    %106 = arith.addf %105, %104 : vector<8x48xf32>
    %107 = arith.divf %105, %106 : vector<8x48xf32>
    %108 = vector.extract_strided_slice %101 {offsets = [0, 48], sizes = [8, 16], strides = [1, 1]} : vector<8x64xf32> to vector<8x16xf32>
    %109 = math.tanh %108 : vector<8x16xf32>
    %110 = vector.extract_strided_slice %107 {offsets = [0, 0], sizes = [8, 16], strides = [1, 1]} : vector<8x48xf32> to vector<8x16xf32>
    %111 = vector.extract_strided_slice %107 {offsets = [0, 16], sizes = [8, 16], strides = [1, 1]} : vector<8x48xf32> to vector<8x16xf32>
    %112 = vector.extract_strided_slice %107 {offsets = [0, 32], sizes = [8, 16], strides = [1, 1]} : vector<8x48xf32> to vector<8x16xf32>
    %113 = arith.mulf %111, %75 : vector<8x16xf32>
    %114 = arith.mulf %110, %109 : vector<8x16xf32>
    %115 = arith.addf %113, %114 : vector<8x16xf32>
    %116 = math.tanh %115 : vector<8x16xf32>
    %117 = arith.mulf %112, %116 : vector<8x16xf32>
    %118 = tpu.concatenate %117, %96 in 1 : vector<8x16xf32>, vector<8x16xf32> -> vector<8x32xf32>
    %cst_31 = arith.constant dense<0.000000e+00> : vector<8x64xf32>
    %119 = tpu.matmul %118, %12, %cst_31 {dimension_numbers = #tpu.dot_dimension_numbers<[1], [0], [0], [1], [0, 0, 1, 1], [], []>} : vector<8x32xf32>, vector<32x64xf32>, vector<8x64xf32> -> vector<8x64xf32>
    %120 = arith.addf %119, %15 : vector<8x64xf32>
    %121 = vector.extract_strided_slice %120 {offsets = [0, 0], sizes = [8, 48], strides = [1, 1]} : vector<8x64xf32> to vector<8x48xf32>
    %122 = arith.negf %121 : vector<8x48xf32>
    %123 = math.exp %122 : vector<8x48xf32>
    %cst_32 = arith.constant 1.000000e+00 : f32
    %124 = vector.broadcast %cst_32 : f32 to vector<8x48xf32>
    %125 = arith.addf %124, %123 : vector<8x48xf32>
    %126 = arith.divf %124, %125 : vector<8x48xf32>
    %127 = vector.extract_strided_slice %120 {offsets = [0, 48], sizes = [8, 16], strides = [1, 1]} : vector<8x64xf32> to vector<8x16xf32>
    %128 = math.tanh %127 : vector<8x16xf32>
    %129 = vector.extract_strided_slice %126 {offsets = [0, 0], sizes = [8, 16], strides = [1, 1]} : vector<8x48xf32> to vector<8x16xf32>
    %130 = vector.extract_strided_slice %126 {offsets = [0, 16], sizes = [8, 16], strides = [1, 1]} : vector<8x48xf32> to vector<8x16xf32>
    %131 = vector.extract_strided_slice %126 {offsets = [0, 32], sizes = [8, 16], strides = [1, 1]} : vector<8x48xf32> to vector<8x16xf32>
    %132 = arith.mulf %130, %94 : vector<8x16xf32>
    %133 = arith.mulf %129, %128 : vector<8x16xf32>
    %134 = arith.addf %132, %133 : vector<8x16xf32>
    %135 = math.tanh %134 : vector<8x16xf32>
    %136 = arith.mulf %131, %135 : vector<8x16xf32>
    %c3_i32 = arith.constant 3 : i32
    %137 = arith.index_cast %c3_i32 : i32 to index
    %c0_33 = arith.constant 0 : index
    %c0_34 = arith.constant 0 : index
    %138 = vector.load %arg10[%137, %c0_33, %c0_34] : memref<8x8x64xf32, #tpu.memory_space<vmem>>, vector<1x8x64xf32>
    %139 = vector.shape_cast %138 : vector<1x8x64xf32> to vector<8x64xf32>
    %cst_35 = arith.constant dense<0.000000e+00> : vector<8x64xf32>
    %140 = tpu.matmul %117, %11, %cst_35 {dimension_numbers = #tpu.dot_dimension_numbers<[1], [0], [0], [1], [0, 0, 1, 1], [], []>} : vector<8x16xf32>, vector<16x64xf32>, vector<8x64xf32> -> vector<8x64xf32>
    %141 = arith.addf %139, %140 : vector<8x64xf32>
    %142 = vector.extract_strided_slice %141 {offsets = [0, 0], sizes = [8, 48], strides = [1, 1]} : vector<8x64xf32> to vector<8x48xf32>
    %143 = arith.negf %142 : vector<8x48xf32>
    %144 = math.exp %143 : vector<8x48xf32>
    %cst_36 = arith.constant 1.000000e+00 : f32
    %145 = vector.broadcast %cst_36 : f32 to vector<8x48xf32>
    %146 = arith.addf %145, %144 : vector<8x48xf32>
    %147 = arith.divf %145, %146 : vector<8x48xf32>
    %148 = vector.extract_strided_slice %141 {offsets = [0, 48], sizes = [8, 16], strides = [1, 1]} : vector<8x64xf32> to vector<8x16xf32>
    %149 = math.tanh %148 : vector<8x16xf32>
    %150 = vector.extract_strided_slice %147 {offsets = [0, 0], sizes = [8, 16], strides = [1, 1]} : vector<8x48xf32> to vector<8x16xf32>
    %151 = vector.extract_strided_slice %147 {offsets = [0, 16], sizes = [8, 16], strides = [1, 1]} : vector<8x48xf32> to vector<8x16xf32>
    %152 = vector.extract_strided_slice %147 {offsets = [0, 32], sizes = [8, 16], strides = [1, 1]} : vector<8x48xf32> to vector<8x16xf32>
    %153 = arith.mulf %151, %115 : vector<8x16xf32>
    %154 = arith.mulf %150, %149 : vector<8x16xf32>
    %155 = arith.addf %153, %154 : vector<8x16xf32>
    %156 = math.tanh %155 : vector<8x16xf32>
    %157 = arith.mulf %152, %156 : vector<8x16xf32>
    %158 = tpu.concatenate %157, %136 in 1 : vector<8x16xf32>, vector<8x16xf32> -> vector<8x32xf32>
    %cst_37 = arith.constant dense<0.000000e+00> : vector<8x64xf32>
    %159 = tpu.matmul %158, %12, %cst_37 {dimension_numbers = #tpu.dot_dimension_numbers<[1], [0], [0], [1], [0, 0, 1, 1], [], []>} : vector<8x32xf32>, vector<32x64xf32>, vector<8x64xf32> -> vector<8x64xf32>
    %160 = arith.addf %159, %15 : vector<8x64xf32>
    %161 = vector.extract_strided_slice %160 {offsets = [0, 0], sizes = [8, 48], strides = [1, 1]} : vector<8x64xf32> to vector<8x48xf32>
    %162 = arith.negf %161 : vector<8x48xf32>
    %163 = math.exp %162 : vector<8x48xf32>
    %cst_38 = arith.constant 1.000000e+00 : f32
    %164 = vector.broadcast %cst_38 : f32 to vector<8x48xf32>
    %165 = arith.addf %164, %163 : vector<8x48xf32>
    %166 = arith.divf %164, %165 : vector<8x48xf32>
    %167 = vector.extract_strided_slice %160 {offsets = [0, 48], sizes = [8, 16], strides = [1, 1]} : vector<8x64xf32> to vector<8x16xf32>
    %168 = math.tanh %167 : vector<8x16xf32>
    %169 = vector.extract_strided_slice %166 {offsets = [0, 0], sizes = [8, 16], strides = [1, 1]} : vector<8x48xf32> to vector<8x16xf32>
    %170 = vector.extract_strided_slice %166 {offsets = [0, 16], sizes = [8, 16], strides = [1, 1]} : vector<8x48xf32> to vector<8x16xf32>
    %171 = vector.extract_strided_slice %166 {offsets = [0, 32], sizes = [8, 16], strides = [1, 1]} : vector<8x48xf32> to vector<8x16xf32>
    %172 = arith.mulf %170, %134 : vector<8x16xf32>
    %173 = arith.mulf %169, %168 : vector<8x16xf32>
    %174 = arith.addf %172, %173 : vector<8x16xf32>
    %175 = math.tanh %174 : vector<8x16xf32>
    %176 = arith.mulf %171, %175 : vector<8x16xf32>
    %c4_i32 = arith.constant 4 : i32
    %177 = arith.index_cast %c4_i32 : i32 to index
    %c0_39 = arith.constant 0 : index
    %c0_40 = arith.constant 0 : index
    %178 = vector.load %arg10[%177, %c0_39, %c0_40] : memref<8x8x64xf32, #tpu.memory_space<vmem>>, vector<1x8x64xf32>
    %179 = vector.shape_cast %178 : vector<1x8x64xf32> to vector<8x64xf32>
    %cst_41 = arith.constant dense<0.000000e+00> : vector<8x64xf32>
    %180 = tpu.matmul %157, %11, %cst_41 {dimension_numbers = #tpu.dot_dimension_numbers<[1], [0], [0], [1], [0, 0, 1, 1], [], []>} : vector<8x16xf32>, vector<16x64xf32>, vector<8x64xf32> -> vector<8x64xf32>
    %181 = arith.addf %179, %180 : vector<8x64xf32>
    %182 = vector.extract_strided_slice %181 {offsets = [0, 0], sizes = [8, 48], strides = [1, 1]} : vector<8x64xf32> to vector<8x48xf32>
    %183 = arith.negf %182 : vector<8x48xf32>
    %184 = math.exp %183 : vector<8x48xf32>
    %cst_42 = arith.constant 1.000000e+00 : f32
    %185 = vector.broadcast %cst_42 : f32 to vector<8x48xf32>
    %186 = arith.addf %185, %184 : vector<8x48xf32>
    %187 = arith.divf %185, %186 : vector<8x48xf32>
    %188 = vector.extract_strided_slice %181 {offsets = [0, 48], sizes = [8, 16], strides = [1, 1]} : vector<8x64xf32> to vector<8x16xf32>
    %189 = math.tanh %188 : vector<8x16xf32>
    %190 = vector.extract_strided_slice %187 {offsets = [0, 0], sizes = [8, 16], strides = [1, 1]} : vector<8x48xf32> to vector<8x16xf32>
    %191 = vector.extract_strided_slice %187 {offsets = [0, 16], sizes = [8, 16], strides = [1, 1]} : vector<8x48xf32> to vector<8x16xf32>
    %192 = vector.extract_strided_slice %187 {offsets = [0, 32], sizes = [8, 16], strides = [1, 1]} : vector<8x48xf32> to vector<8x16xf32>
    %193 = arith.mulf %191, %155 : vector<8x16xf32>
    %194 = arith.mulf %190, %189 : vector<8x16xf32>
    %195 = arith.addf %193, %194 : vector<8x16xf32>
    %196 = math.tanh %195 : vector<8x16xf32>
    %197 = arith.mulf %192, %196 : vector<8x16xf32>
    %198 = tpu.concatenate %197, %176 in 1 : vector<8x16xf32>, vector<8x16xf32> -> vector<8x32xf32>
    %cst_43 = arith.constant dense<0.000000e+00> : vector<8x64xf32>
    %199 = tpu.matmul %198, %12, %cst_43 {dimension_numbers = #tpu.dot_dimension_numbers<[1], [0], [0], [1], [0, 0, 1, 1], [], []>} : vector<8x32xf32>, vector<32x64xf32>, vector<8x64xf32> -> vector<8x64xf32>
    %200 = arith.addf %199, %15 : vector<8x64xf32>
    %201 = vector.extract_strided_slice %200 {offsets = [0, 0], sizes = [8, 48], strides = [1, 1]} : vector<8x64xf32> to vector<8x48xf32>
    %202 = arith.negf %201 : vector<8x48xf32>
    %203 = math.exp %202 : vector<8x48xf32>
    %cst_44 = arith.constant 1.000000e+00 : f32
    %204 = vector.broadcast %cst_44 : f32 to vector<8x48xf32>
    %205 = arith.addf %204, %203 : vector<8x48xf32>
    %206 = arith.divf %204, %205 : vector<8x48xf32>
    %207 = vector.extract_strided_slice %200 {offsets = [0, 48], sizes = [8, 16], strides = [1, 1]} : vector<8x64xf32> to vector<8x16xf32>
    %208 = math.tanh %207 : vector<8x16xf32>
    %209 = vector.extract_strided_slice %206 {offsets = [0, 0], sizes = [8, 16], strides = [1, 1]} : vector<8x48xf32> to vector<8x16xf32>
    %210 = vector.extract_strided_slice %206 {offsets = [0, 16], sizes = [8, 16], strides = [1, 1]} : vector<8x48xf32> to vector<8x16xf32>
    %211 = vector.extract_strided_slice %206 {offsets = [0, 32], sizes = [8, 16], strides = [1, 1]} : vector<8x48xf32> to vector<8x16xf32>
    %212 = arith.mulf %210, %174 : vector<8x16xf32>
    %213 = arith.mulf %209, %208 : vector<8x16xf32>
    %214 = arith.addf %212, %213 : vector<8x16xf32>
    %215 = math.tanh %214 : vector<8x16xf32>
    %216 = arith.mulf %211, %215 : vector<8x16xf32>
    %c5_i32 = arith.constant 5 : i32
    %217 = arith.index_cast %c5_i32 : i32 to index
    %c0_45 = arith.constant 0 : index
    %c0_46 = arith.constant 0 : index
    %218 = vector.load %arg10[%217, %c0_45, %c0_46] : memref<8x8x64xf32, #tpu.memory_space<vmem>>, vector<1x8x64xf32>
    %219 = vector.shape_cast %218 : vector<1x8x64xf32> to vector<8x64xf32>
    %cst_47 = arith.constant dense<0.000000e+00> : vector<8x64xf32>
    %220 = tpu.matmul %197, %11, %cst_47 {dimension_numbers = #tpu.dot_dimension_numbers<[1], [0], [0], [1], [0, 0, 1, 1], [], []>} : vector<8x16xf32>, vector<16x64xf32>, vector<8x64xf32> -> vector<8x64xf32>
    %221 = arith.addf %219, %220 : vector<8x64xf32>
    %222 = vector.extract_strided_slice %221 {offsets = [0, 0], sizes = [8, 48], strides = [1, 1]} : vector<8x64xf32> to vector<8x48xf32>
    %223 = arith.negf %222 : vector<8x48xf32>
    %224 = math.exp %223 : vector<8x48xf32>
    %cst_48 = arith.constant 1.000000e+00 : f32
    %225 = vector.broadcast %cst_48 : f32 to vector<8x48xf32>
    %226 = arith.addf %225, %224 : vector<8x48xf32>
    %227 = arith.divf %225, %226 : vector<8x48xf32>
    %228 = vector.extract_strided_slice %221 {offsets = [0, 48], sizes = [8, 16], strides = [1, 1]} : vector<8x64xf32> to vector<8x16xf32>
    %229 = math.tanh %228 : vector<8x16xf32>
    %230 = vector.extract_strided_slice %227 {offsets = [0, 0], sizes = [8, 16], strides = [1, 1]} : vector<8x48xf32> to vector<8x16xf32>
    %231 = vector.extract_strided_slice %227 {offsets = [0, 16], sizes = [8, 16], strides = [1, 1]} : vector<8x48xf32> to vector<8x16xf32>
    %232 = vector.extract_strided_slice %227 {offsets = [0, 32], sizes = [8, 16], strides = [1, 1]} : vector<8x48xf32> to vector<8x16xf32>
    %233 = arith.mulf %231, %195 : vector<8x16xf32>
    %234 = arith.mulf %230, %229 : vector<8x16xf32>
    %235 = arith.addf %233, %234 : vector<8x16xf32>
    %236 = math.tanh %235 : vector<8x16xf32>
    %237 = arith.mulf %232, %236 : vector<8x16xf32>
    %238 = tpu.concatenate %237, %216 in 1 : vector<8x16xf32>, vector<8x16xf32> -> vector<8x32xf32>
    %cst_49 = arith.constant dense<0.000000e+00> : vector<8x64xf32>
    %239 = tpu.matmul %238, %12, %cst_49 {dimension_numbers = #tpu.dot_dimension_numbers<[1], [0], [0], [1], [0, 0, 1, 1], [], []>} : vector<8x32xf32>, vector<32x64xf32>, vector<8x64xf32> -> vector<8x64xf32>
    %240 = arith.addf %239, %15 : vector<8x64xf32>
    %241 = vector.extract_strided_slice %240 {offsets = [0, 0], sizes = [8, 48], strides = [1, 1]} : vector<8x64xf32> to vector<8x48xf32>
    %242 = arith.negf %241 : vector<8x48xf32>
    %243 = math.exp %242 : vector<8x48xf32>
    %cst_50 = arith.constant 1.000000e+00 : f32
    %244 = vector.broadcast %cst_50 : f32 to vector<8x48xf32>
    %245 = arith.addf %244, %243 : vector<8x48xf32>
    %246 = arith.divf %244, %245 : vector<8x48xf32>
    %247 = vector.extract_strided_slice %240 {offsets = [0, 48], sizes = [8, 16], strides = [1, 1]} : vector<8x64xf32> to vector<8x16xf32>
    %248 = math.tanh %247 : vector<8x16xf32>
    %249 = vector.extract_strided_slice %246 {offsets = [0, 0], sizes = [8, 16], strides = [1, 1]} : vector<8x48xf32> to vector<8x16xf32>
    %250 = vector.extract_strided_slice %246 {offsets = [0, 16], sizes = [8, 16], strides = [1, 1]} : vector<8x48xf32> to vector<8x16xf32>
    %251 = vector.extract_strided_slice %246 {offsets = [0, 32], sizes = [8, 16], strides = [1, 1]} : vector<8x48xf32> to vector<8x16xf32>
    %252 = arith.mulf %250, %214 : vector<8x16xf32>
    %253 = arith.mulf %249, %248 : vector<8x16xf32>
    %254 = arith.addf %252, %253 : vector<8x16xf32>
    %255 = math.tanh %254 : vector<8x16xf32>
    %256 = arith.mulf %251, %255 : vector<8x16xf32>
    %c6_i32 = arith.constant 6 : i32
    %257 = arith.index_cast %c6_i32 : i32 to index
    %c0_51 = arith.constant 0 : index
    %c0_52 = arith.constant 0 : index
    %258 = vector.load %arg10[%257, %c0_51, %c0_52] : memref<8x8x64xf32, #tpu.memory_space<vmem>>, vector<1x8x64xf32>
    %259 = vector.shape_cast %258 : vector<1x8x64xf32> to vector<8x64xf32>
    %cst_53 = arith.constant dense<0.000000e+00> : vector<8x64xf32>
    %260 = tpu.matmul %237, %11, %cst_53 {dimension_numbers = #tpu.dot_dimension_numbers<[1], [0], [0], [1], [0, 0, 1, 1], [], []>} : vector<8x16xf32>, vector<16x64xf32>, vector<8x64xf32> -> vector<8x64xf32>
    %261 = arith.addf %259, %260 : vector<8x64xf32>
    %262 = vector.extract_strided_slice %261 {offsets = [0, 0], sizes = [8, 48], strides = [1, 1]} : vector<8x64xf32> to vector<8x48xf32>
    %263 = arith.negf %262 : vector<8x48xf32>
    %264 = math.exp %263 : vector<8x48xf32>
    %cst_54 = arith.constant 1.000000e+00 : f32
    %265 = vector.broadcast %cst_54 : f32 to vector<8x48xf32>
    %266 = arith.addf %265, %264 : vector<8x48xf32>
    %267 = arith.divf %265, %266 : vector<8x48xf32>
    %268 = vector.extract_strided_slice %261 {offsets = [0, 48], sizes = [8, 16], strides = [1, 1]} : vector<8x64xf32> to vector<8x16xf32>
    %269 = math.tanh %268 : vector<8x16xf32>
    %270 = vector.extract_strided_slice %267 {offsets = [0, 0], sizes = [8, 16], strides = [1, 1]} : vector<8x48xf32> to vector<8x16xf32>
    %271 = vector.extract_strided_slice %267 {offsets = [0, 16], sizes = [8, 16], strides = [1, 1]} : vector<8x48xf32> to vector<8x16xf32>
    %272 = vector.extract_strided_slice %267 {offsets = [0, 32], sizes = [8, 16], strides = [1, 1]} : vector<8x48xf32> to vector<8x16xf32>
    %273 = arith.mulf %271, %235 : vector<8x16xf32>
    %274 = arith.mulf %270, %269 : vector<8x16xf32>
    %275 = arith.addf %273, %274 : vector<8x16xf32>
    %276 = math.tanh %275 : vector<8x16xf32>
    %277 = arith.mulf %272, %276 : vector<8x16xf32>
    %278 = tpu.concatenate %277, %256 in 1 : vector<8x16xf32>, vector<8x16xf32> -> vector<8x32xf32>
    %cst_55 = arith.constant dense<0.000000e+00> : vector<8x64xf32>
    %279 = tpu.matmul %278, %12, %cst_55 {dimension_numbers = #tpu.dot_dimension_numbers<[1], [0], [0], [1], [0, 0, 1, 1], [], []>} : vector<8x32xf32>, vector<32x64xf32>, vector<8x64xf32> -> vector<8x64xf32>
    %280 = arith.addf %279, %15 : vector<8x64xf32>
    %281 = vector.extract_strided_slice %280 {offsets = [0, 0], sizes = [8, 48], strides = [1, 1]} : vector<8x64xf32> to vector<8x48xf32>
    %282 = arith.negf %281 : vector<8x48xf32>
    %283 = math.exp %282 : vector<8x48xf32>
    %cst_56 = arith.constant 1.000000e+00 : f32
    %284 = vector.broadcast %cst_56 : f32 to vector<8x48xf32>
    %285 = arith.addf %284, %283 : vector<8x48xf32>
    %286 = arith.divf %284, %285 : vector<8x48xf32>
    %287 = vector.extract_strided_slice %280 {offsets = [0, 48], sizes = [8, 16], strides = [1, 1]} : vector<8x64xf32> to vector<8x16xf32>
    %288 = math.tanh %287 : vector<8x16xf32>
    %289 = vector.extract_strided_slice %286 {offsets = [0, 0], sizes = [8, 16], strides = [1, 1]} : vector<8x48xf32> to vector<8x16xf32>
    %290 = vector.extract_strided_slice %286 {offsets = [0, 16], sizes = [8, 16], strides = [1, 1]} : vector<8x48xf32> to vector<8x16xf32>
    %291 = vector.extract_strided_slice %286 {offsets = [0, 32], sizes = [8, 16], strides = [1, 1]} : vector<8x48xf32> to vector<8x16xf32>
    %292 = arith.mulf %290, %254 : vector<8x16xf32>
    %293 = arith.mulf %289, %288 : vector<8x16xf32>
    %294 = arith.addf %292, %293 : vector<8x16xf32>
    %295 = math.tanh %294 : vector<8x16xf32>
    %296 = arith.mulf %291, %295 : vector<8x16xf32>
    %c7_i32 = arith.constant 7 : i32
    %297 = arith.index_cast %c7_i32 : i32 to index
    %c0_57 = arith.constant 0 : index
    %c0_58 = arith.constant 0 : index
    %298 = vector.load %arg10[%297, %c0_57, %c0_58] : memref<8x8x64xf32, #tpu.memory_space<vmem>>, vector<1x8x64xf32>
    %299 = vector.shape_cast %298 : vector<1x8x64xf32> to vector<8x64xf32>
    %cst_59 = arith.constant dense<0.000000e+00> : vector<8x64xf32>
    %300 = tpu.matmul %277, %11, %cst_59 {dimension_numbers = #tpu.dot_dimension_numbers<[1], [0], [0], [1], [0, 0, 1, 1], [], []>} : vector<8x16xf32>, vector<16x64xf32>, vector<8x64xf32> -> vector<8x64xf32>
    %301 = arith.addf %299, %300 : vector<8x64xf32>
    %302 = vector.extract_strided_slice %301 {offsets = [0, 0], sizes = [8, 48], strides = [1, 1]} : vector<8x64xf32> to vector<8x48xf32>
    %303 = arith.negf %302 : vector<8x48xf32>
    %304 = math.exp %303 : vector<8x48xf32>
    %cst_60 = arith.constant 1.000000e+00 : f32
    %305 = vector.broadcast %cst_60 : f32 to vector<8x48xf32>
    %306 = arith.addf %305, %304 : vector<8x48xf32>
    %307 = arith.divf %305, %306 : vector<8x48xf32>
    %308 = vector.extract_strided_slice %301 {offsets = [0, 48], sizes = [8, 16], strides = [1, 1]} : vector<8x64xf32> to vector<8x16xf32>
    %309 = math.tanh %308 : vector<8x16xf32>
    %310 = vector.extract_strided_slice %307 {offsets = [0, 0], sizes = [8, 16], strides = [1, 1]} : vector<8x48xf32> to vector<8x16xf32>
    %311 = vector.extract_strided_slice %307 {offsets = [0, 16], sizes = [8, 16], strides = [1, 1]} : vector<8x48xf32> to vector<8x16xf32>
    %312 = vector.extract_strided_slice %307 {offsets = [0, 32], sizes = [8, 16], strides = [1, 1]} : vector<8x48xf32> to vector<8x16xf32>
    %313 = arith.mulf %311, %275 : vector<8x16xf32>
    %314 = arith.mulf %310, %309 : vector<8x16xf32>
    %315 = arith.addf %313, %314 : vector<8x16xf32>
    %316 = math.tanh %315 : vector<8x16xf32>
    %317 = arith.mulf %312, %316 : vector<8x16xf32>
    %318 = tpu.concatenate %317, %296 in 1 : vector<8x16xf32>, vector<8x16xf32> -> vector<8x32xf32>
    %cst_61 = arith.constant dense<0.000000e+00> : vector<8x64xf32>
    %319 = tpu.matmul %318, %12, %cst_61 {dimension_numbers = #tpu.dot_dimension_numbers<[1], [0], [0], [1], [0, 0, 1, 1], [], []>} : vector<8x32xf32>, vector<32x64xf32>, vector<8x64xf32> -> vector<8x64xf32>
    %320 = arith.addf %319, %15 : vector<8x64xf32>
    %321 = vector.extract_strided_slice %320 {offsets = [0, 0], sizes = [8, 48], strides = [1, 1]} : vector<8x64xf32> to vector<8x48xf32>
    %322 = arith.negf %321 : vector<8x48xf32>
    %323 = math.exp %322 : vector<8x48xf32>
    %cst_62 = arith.constant 1.000000e+00 : f32
    %324 = vector.broadcast %cst_62 : f32 to vector<8x48xf32>
    %325 = arith.addf %324, %323 : vector<8x48xf32>
    %326 = arith.divf %324, %325 : vector<8x48xf32>
    %327 = vector.extract_strided_slice %320 {offsets = [0, 48], sizes = [8, 16], strides = [1, 1]} : vector<8x64xf32> to vector<8x16xf32>
    %328 = math.tanh %327 : vector<8x16xf32>
    %329 = vector.extract_strided_slice %326 {offsets = [0, 0], sizes = [8, 16], strides = [1, 1]} : vector<8x48xf32> to vector<8x16xf32>
    %330 = vector.extract_strided_slice %326 {offsets = [0, 16], sizes = [8, 16], strides = [1, 1]} : vector<8x48xf32> to vector<8x16xf32>
    %331 = vector.extract_strided_slice %326 {offsets = [0, 32], sizes = [8, 16], strides = [1, 1]} : vector<8x48xf32> to vector<8x16xf32>
    %332 = arith.mulf %330, %294 : vector<8x16xf32>
    %333 = arith.mulf %329, %328 : vector<8x16xf32>
    %334 = arith.addf %332, %333 : vector<8x16xf32>
    %335 = math.tanh %334 : vector<8x16xf32>
    %336 = arith.mulf %331, %335 : vector<8x16xf32>
    %c8_i32 = arith.constant 8 : i32
    %c0_63 = arith.constant 0 : index
    %c0_64 = arith.constant 0 : index
    %337 = vector.load %arg7[%c0_63, %c0_64] : memref<16x128xf32, #tpu.memory_space<vmem>>, vector<16x128xf32>
    %cst_65 = arith.constant dense<0.000000e+00> : vector<8x128xf32>
    %338 = tpu.matmul %336, %337, %cst_65 {dimension_numbers = #tpu.dot_dimension_numbers<[1], [0], [0], [1], [0, 0, 1, 1], [], []>} : vector<8x16xf32>, vector<16x128xf32>, vector<8x128xf32> -> vector<8x128xf32>
    %c0_66 = arith.constant 0 : index
    %c0_67 = arith.constant 0 : index
    %339 = vector.load %arg8[%c0_66, %c0_67] : memref<1x128xf32, #tpu.memory_space<vmem>>, vector<1x128xf32>
    %340 = vector.broadcast %339 : vector<1x128xf32> to vector<8x128xf32>
    %341 = arith.addf %338, %340 : vector<8x128xf32>
    %c0_68 = arith.constant 0 : index
    %c0_69 = arith.constant 0 : index
    %342 = vector.load %arg9[%c0_68, %c0_69] : memref<8x128xf32, #tpu.memory_space<vmem>>, vector<8x128xf32>
    tpu.vector_store %arg9[%c0_68, %c0_69], %341 {strides = array<i32>} : memref<8x128xf32, #tpu.memory_space<vmem>>, vector<8x128xf32>,
    return
  }
  func.func @transform_0(%arg0: i32) -> (i32, i32, i32) {
    %c0_i32 = arith.constant 0 : i32
    %c0_i32_0 = arith.constant 0 : i32
    %c0_i32_1 = arith.constant 0 : i32
    return %c0_i32, %arg0, %c0_i32_0 : i32, i32, i32
  }
  func.func @transform_1(%arg0: i32) -> (i32, i32) {
    %c0_i32 = arith.constant 0 : i32
    %c0_i32_0 = arith.constant 0 : i32
    %c0_i32_1 = arith.constant 0 : i32
    return %c0_i32, %c0_i32_0 : i32, i32
  }
  func.func @transform_2(%arg0: i32) -> (i32, i32) {
    %c0_i32 = arith.constant 0 : i32
    %c0_i32_0 = arith.constant 0 : i32
    %c0_i32_1 = arith.constant 0 : i32
    return %c0_i32, %c0_i32_0 : i32, i32
  }
  func.func @transform_3(%arg0: i32) -> (i32, i32) {
    %c0_i32 = arith.constant 0 : i32
    %c0_i32_0 = arith.constant 0 : i32
    %c0_i32_1 = arith.constant 0 : i32
    return %c0_i32, %c0_i32_0 : i32, i32
  }
  func.func @transform_4(%arg0: i32) -> (i32, i32) {
    %c0_i32 = arith.constant 0 : i32
    %c0_i32_0 = arith.constant 0 : i32
    %c0_i32_1 = arith.constant 0 : i32
    return %c0_i32, %c0_i32_0 : i32, i32
  }
  func.func @transform_5(%arg0: i32) -> (i32, i32) {
    %c0_i32 = arith.constant 0 : i32
    %c0_i32_0 = arith.constant 0 : i32
    %c0_i32_1 = arith.constant 0 : i32
    return %c0_i32, %c0_i32_0 : i32, i32
  }
  func.func @transform_6(%arg0: i32) -> (i32, i32) {
    %c0_i32 = arith.constant 0 : i32
    %c0_i32_0 = arith.constant 0 : i32
    %c0_i32_1 = arith.constant 0 : i32
    return %c0_i32, %c0_i32_0 : i32, i32
  }
  func.func @transform_7(%arg0: i32) -> (i32, i32) {
    %c0_i32 = arith.constant 0 : i32
    %c0_i32_0 = arith.constant 0 : i32
    %c0_i32_1 = arith.constant 0 : i32
    return %c0_i32, %c0_i32_0 : i32, i32
  }
  func.func @transform_8(%arg0: i32) -> (i32, i32) {
    %c0_i32 = arith.constant 0 : i32
    %c0_i32_0 = arith.constant 0 : i32
    return %arg0, %c0_i32 : i32, i32
  }
}

</mosaic_0001>

<llo_original>
// kernel: lstm_model_forward.1
$region0: #{lstm_model_forward.1}
  #allocation0 [shape = 'u32[]', space=smem, size = 0x4, offset = 0x4, fixed_abs, tag = 'smem constant byte address 0x4 - core index']
  #allocation1 [shape = 'u32[72,128]{1,0:T(1,128)}', space=vmem, size = 0x9000, scoped, tag = 'internal scratch']
  #allocation2 [shape = 'f32[8,8,64]{2,1,0:T(8,128)}', space=vmem, size = 0x8000, scoped, tag = 'scratch operand']
  %s0 = inlined_call_operand.vmem [shape: f32[8,8,1], index: 0, kind: input, shape index: {}]
  %s1 = inlined_call_operand.vmem [shape: f32[1,64], index: 1, kind: input, shape index: {}]
  %s2 = inlined_call_operand.vmem [shape: f32[1,64], index: 2, kind: input, shape index: {}]
  %s3 = inlined_call_operand.vmem [shape: f32[16,64], index: 3, kind: input, shape index: {}]
  %s4 = inlined_call_operand.vmem [shape: f32[32,64], index: 4, kind: input, shape index: {}]
  %s5 = inlined_call_operand.vmem [shape: f32[1,64], index: 5, kind: input, shape index: {}]
  %s6 = inlined_call_operand.vmem [shape: f32[16,128], index: 6, kind: input, shape index: {}]
  %s7 = inlined_call_operand.vmem [shape: f32[1,128], index: 7, kind: input, shape index: {}]
  %s8 = inlined_call_operand.vmem [shape: f32[8,128], index: 8, kind: output, shape index: {}]
  %s9 = sld [smem:[#allocation0]]
  $region42: #{lstm_model_forward.1} parent=0
    _
  %s11 = ssub.s32 1, %s9
  %s12 = scalar_select 0, %s11, %s9
  // Predicated region
  $region2: #{lstm_model_forward.1} parent=0 // pred_check
    _
  $region3: #{lstm_model_forward.1} parent=0 // pred_check_branch
    %14 = sbr.rel (0) target = $region5
  $region4: #{lstm_model_forward.1} parent=0 // pred_region
    _
  $region5: #{lstm_model_forward.1} parent=0 // pred_fallthru
    _
  // Predicated region
  $region6: #{lstm_model_forward.1} parent=0 // pred_check
    _
  $region7: #{lstm_model_forward.1} parent=0 // pred_check_branch
    %16 = sbr.rel (0) target = $region9
  $region8: #{lstm_model_forward.1} parent=0 // pred_region
    _
  $region9: #{lstm_model_forward.1} parent=0 // pred_fallthru
    _
  // Predicated region
  $region10: #{lstm_model_forward.1} parent=0 // pred_check
    _
  $region11: #{lstm_model_forward.1} parent=0 // pred_check_branch
    %18 = sbr.rel (0) target = $region13
  $region12: #{lstm_model_forward.1} parent=0 // pred_region
    _
  $region13: #{lstm_model_forward.1} parent=0 // pred_fallthru
    _
  // Predicated region
  $region14: #{lstm_model_forward.1} parent=0 // pred_check
    _
  $region15: #{lstm_model_forward.1} parent=0 // pred_check_branch
    %20 = sbr.rel (0) target = $region17
  $region16: #{lstm_model_forward.1} parent=0 // pred_region
    _
  $region17: #{lstm_model_forward.1} parent=0 // pred_fallthru
    _
  // Predicated region
  $region18: #{lstm_model_forward.1} parent=0 // pred_check
    _
  $region19: #{lstm_model_forward.1} parent=0 // pred_check_branch
    %22 = sbr.rel (0) target = $region21
  $region20: #{lstm_model_forward.1} parent=0 // pred_region
    _
  $region21: #{lstm_model_forward.1} parent=0 // pred_fallthru
    _
  // Predicated region
  $region22: #{lstm_model_forward.1} parent=0 // pred_check
    _
  $region23: #{lstm_model_forward.1} parent=0 // pred_check_branch
    %24 = sbr.rel (0) target = $region25
  $region24: #{lstm_model_forward.1} parent=0 // pred_region
    _
  $region25: #{lstm_model_forward.1} parent=0 // pred_fallthru
    _
  // Predicated region
  $region26: #{lstm_model_forward.1} parent=0 // pred_check
    _
  $region27: #{lstm_model_forward.1} parent=0 // pred_check_branch
    %26 = sbr.rel (0) target = $region29
  $region28: #{lstm_model_forward.1} parent=0 // pred_region
    _
  $region29: #{lstm_model_forward.1} parent=0 // pred_fallthru
    _
  // Predicated region
  $region30: #{lstm_model_forward.1} parent=0 // pred_check
    _
  $region31: #{lstm_model_forward.1} parent=0 // pred_check_branch
    %28 = sbr.rel (0) target = $region33
  $region32: #{lstm_model_forward.1} parent=0 // pred_region
    _
  $region33: #{lstm_model_forward.1} parent=0 // pred_fallthru
    _
  %v29 = vld [vmem:[%s0] sm:$0xff]
  %v30 = vld [vmem:[%s0 + $0x8] sm:$0xff]
  %v31 = vld [vmem:[%s0 + $0x10] sm:$0xff]
  %v32 = vld [vmem:[%s0 + $0x18] sm:$0xff]
  %v33 = vld [vmem:[%s0 + $0x20] sm:$0xff]
  %v34 = vld [vmem:[%s0 + $0x28] sm:$0xff]
  %v35 = vld [vmem:[%s0 + $0x30] sm:$0xff]
  %v36 = vld [vmem:[%s0 + $0x38] sm:$0xff]
  %v37 = vld [vmem:[%s1] sm:$0x1]
  %39 = vset.pattern.permute.xlu0 0
  %40 = vperm.xlu0 %39, %v29
  %v41 = vpop.permute.xlu0 %40
  %44 = vset.pattern.permute.xlu0 0
  %45 = vperm.xlu0 %44, %v30
  %v46 = vpop.permute.xlu0 %45
  %49 = vset.pattern.permute.xlu0 0
  %50 = vperm.xlu0 %49, %v31
  %v51 = vpop.permute.xlu0 %50
  %54 = vset.pattern.permute.xlu0 0
  %55 = vperm.xlu0 %54, %v32
  %v56 = vpop.permute.xlu0 %55
  %59 = vset.pattern.permute.xlu0 0
  %60 = vperm.xlu0 %59, %v33
  %v61 = vpop.permute.xlu0 %60
  %64 = vset.pattern.permute.xlu0 0
  %65 = vperm.xlu0 %64, %v34
  %v66 = vpop.permute.xlu0 %65
  %69 = vset.pattern.permute.xlu0 0
  %70 = vperm.xlu0 %69, %v35
  %v71 = vpop.permute.xlu0 %70
  %74 = vset.pattern.permute.xlu0 0
  %75 = vperm.xlu0 %74, %v36
  %v76 = vpop.permute.xlu0 %75
  %v79 = vperm.slane %v37, 0
  %v81 = vmul.f32 %v41, %v79
  %v82 = vmul.f32 %v46, %v79
  %v83 = vmul.f32 %v51, %v79
  %v84 = vmul.f32 %v56, %v79
  %v85 = vmul.f32 %v61, %v79
  %v86 = vmul.f32 %v66, %v79
  %v87 = vmul.f32 %v71, %v79
  %v88 = vmul.f32 %v76, %v79
  %v89 = vld [vmem:[%s2] sm:$0x1]
  %v91 = vperm.slane %v89, 0
  %v93 = vadd.f32 %v81, %v91
  %v94 = vadd.f32 %v82, %v91
  %v95 = vadd.f32 %v83, %v91
  %v96 = vadd.f32 %v84, %v91
  %v97 = vadd.f32 %v85, %v91
  %v98 = vadd.f32 %v86, %v91
  %v99 = vadd.f32 %v87, %v91
  %v100 = vadd.f32 %v88, %v91
  %vm101 = vcmask 523264
  %102 = vst.msk [vmem:[#allocation2] sm:$0xff] %vm101, %v93
  %103 = vst.msk [vmem:[#allocation2 + $0x8] sm:$0xff] %vm101, %v94
  %104 = vst.msk [vmem:[#allocation2 + $0x10] sm:$0xff] %vm101, %v95
  %105 = vst.msk [vmem:[#allocation2 + $0x18] sm:$0xff] %vm101, %v96
  %106 = vst.msk [vmem:[#allocation2 + $0x20] sm:$0xff] %vm101, %v97
  %107 = vst.msk [vmem:[#allocation2 + $0x28] sm:$0xff] %vm101, %v98
  %108 = vst.msk [vmem:[#allocation2 + $0x30] sm:$0xff] %vm101, %v99
  %109 = vst.msk [vmem:[#allocation2 + $0x38] sm:$0xff] %vm101, %v100
  %v110 = vld [vmem:[%s3] sm:$0xff]
  %v111 = vld [vmem:[%s3 + $0x8] sm:$0xff]
  %v112 = vld [vmem:[%s4] sm:$0xff]
  %v113 = vld [vmem:[%s4 + $0x8] sm:$0xff]
  %v114 = vld [vmem:[%s4 + $0x10] sm:$0xff]
  %v115 = vld [vmem:[%s4 + $0x18] sm:$0xff]
  %v116 = vld [vmem:[%s5] sm:$0x1]
  %v118 = vperm.slane %v116, 0
  %v120 = vld [vmem:[#allocation2] sm:$0xff]
  %vm121 = vcmask 130048
  %v123 = vsel %vm121, 0.0, 0
  %125 = vmatpush.msra.mxu0 0.0
  %126 = vmatpush.msra.mxu0 0.0
  %127 = vmatpush.msra.mxu0 0.0
  %128 = vmatpush.msra.mxu0 0.0
  %129 = vmatpush.msra.mxu0 0.0
  %130 = vmatpush.msra.mxu0 0.0
  %131 = vmatpush.msra.mxu0 0.0
  %132 = vmatpush.msra.mxu0 0.0
  %133 = vmatpush.msra.mxu0 0.0
  %134 = vmatpush.msra.mxu0 0.0
  %135 = vmatpush.msra.mxu0 0.0
  %136 = vmatpush.msra.mxu0 0.0
  %137 = vmatpush.msra.mxu0 0.0
  %138 = vmatpush.msra.mxu0 0.0
  %139 = vmatpush.msra.mxu0 %v111
  %140 = vmatpush.msra.mxu0 %v110
  %141 = vmatmul.f32.gmra.mxu0 %v123
  %v142 = vpop.f32.mrf.mxu0
  %v143 = vadd.f32 0.0, %v142
  %144 = vdwg.mxu0
  %v145 = vadd.f32 %v120, %v143
  %v146 = vxor.u32 %v145, 2147483648
  %v147 = vmul.f32 %v146, 1.442695
  %v148 = vpow.pop %v147
  %v149 = vadd.f32 %v148, 1.0
  %v150 = vrcp.pop %v149
  %v151 = vmul.f32 %v149, %v150
  %v152 = vsub.f32 1.0, %v151
  %v153 = vmul.f32 %v150, %v152
  %v154 = vadd.f32 %v150, %v153
  %vm155 = vweird.f32 %v149
  %vm156 = vweird.f32 %v150
  %vm157 = vmor %vm155, %vm156
  %v158 = vsel %vm157, %v150, %v154
  %v159 = vand.u32 2147483647, %v149
  %vm160 = vcmp.eq.f32.partialorder %v159, 8.507059e+37
  %v161 = vand.u32 %v149, 2147483648
  %v162 = vor.u32 1.1754944e-38, %v161
  %v163 = vsel %vm160, %v162, %v158
  %v164 = vmul.f32 1.0, %v163
  %v165 = vtanh.pop %v145
  %v166 = vmul.f32 %v164, 0.0
  %168 = vrot.lane.b32.xlu0 %v165, 80
  %v169 = vpop.permute.xlu0 %168
  %v171 = vmul.f32 %v164, %v169
  %173 = vrot.lane.b32.xlu0 %v171, 16
  %v174 = vpop.permute.xlu0 %173
  %v176 = vadd.f32 %v166, %v174
  %v177 = vtanh.pop %v176
  %179 = vrot.lane.b32.xlu0 %v177, 16
  %v180 = vpop.permute.xlu0 %179
  %v182 = vmul.f32 %v164, %v180
  %184 = vrot.lane.b32.xlu0 %v182, 96
  %v185 = vpop.permute.xlu0 %184
  %v187 = vsel %vm121, %v185, 0.0
  %vm188 = vcmask 261120
  %v190 = vsel %vm188, %v187, 0
  %192 = vmatpush.msra.mxu0 0.0
  %193 = vmatpush.msra.mxu0 0.0
  %194 = vmatpush.msra.mxu0 0.0
  %195 = vmatpush.msra.mxu0 0.0
  %196 = vmatpush.msra.mxu0 0.0
  %197 = vmatpush.msra.mxu0 0.0
  %198 = vmatpush.msra.mxu0 0.0
  %199 = vmatpush.msra.mxu0 0.0
  %200 = vmatpush.msra.mxu0 0.0
  %201 = vmatpush.msra.mxu0 0.0
  %202 = vmatpush.msra.mxu0 0.0
  %203 = vmatpush.msra.mxu0 0.0
  %204 = vmatpush.msra.mxu0 %v115
  %205 = vmatpush.msra.mxu0 %v114
  %206 = vmatpush.msra.mxu0 %v113
  %207 = vmatpush.msra.mxu0 %v112
  %208 = vmatmul.f32.gmra.mxu0 %v190
  %v209 = vpop.f32.mrf.mxu0
  %v210 = vadd.f32 %v118, %v209
  %211 = vdwg.mxu0
  %v212 = vxor.u32 %v210, 2147483648
  %v213 = vmul.f32 %v212, 1.442695
  %v214 = vpow.pop %v213
  %v215 = vadd.f32 %v214, 1.0
  %v216 = vrcp.pop %v215
  %v217 = vmul.f32 %v215, %v216
  %v218 = vsub.f32 1.0, %v217
  %v219 = vmul.f32 %v216, %v218
  %v220 = vadd.f32 %v216, %v219
  %vm221 = vweird.f32 %v215
  %vm222 = vweird.f32 %v216
  %vm223 = vmor %vm221, %vm222
  %v224 = vsel %vm223, %v216, %v220
  %v225 = vand.u32 2147483647, %v215
  %vm226 = vcmp.eq.f32.partialorder %v225, 8.507059e+37
  %v227 = vand.u32 %v215, 2147483648
  %v228 = vor.u32 1.1754944e-38, %v227
  %v229 = vsel %vm226, %v228, %v224
  %v230 = vmul.f32 1.0, %v229
  %v231 = vtanh.pop %v210
  %v232 = vmul.f32 %v230, 0.0
  %234 = vrot.lane.b32.xlu0 %v231, 80
  %v235 = vpop.permute.xlu0 %234
  %v237 = vmul.f32 %v230, %v235
  %239 = vrot.lane.b32.xlu0 %v237, 16
  %v240 = vpop.permute.xlu0 %239
  %v242 = vadd.f32 %v232, %v240
  %v243 = vtanh.pop %v242
  %245 = vrot.lane.b32.xlu0 %v243, 16
  %v246 = vpop.permute.xlu0 %245
  %v248 = vmul.f32 %v230, %v246
  %s249 = scalar_lea.vmem [#allocation2], 8
  %v250 = vld [vmem:[%s249] sm:$0xff]
  %v251 = vsel %vm121, %v185, 0
  %253 = vmatpush.msra.mxu0 0.0
  %254 = vmatpush.msra.mxu0 0.0
  %255 = vmatpush.msra.mxu0 0.0
  %256 = vmatpush.msra.mxu0 0.0
  %257 = vmatpush.msra.mxu0 0.0
  %258 = vmatpush.msra.mxu0 0.0
  %259 = vmatpush.msra.mxu0 0.0
  %260 = vmatpush.msra.mxu0 0.0
  %261 = vmatpush.msra.mxu0 0.0
  %262 = vmatpush.msra.mxu0 0.0
  %263 = vmatpush.msra.mxu0 0.0
  %264 = vmatpush.msra.mxu0 0.0
  %265 = vmatpush.msra.mxu0 0.0
  %266 = vmatpush.msra.mxu0 0.0
  %267 = vmatpush.msra.mxu0 %v111
  %268 = vmatpush.msra.mxu0 %v110
  %269 = vmatmul.f32.gmra.mxu0 %v251
  %v270 = vpop.f32.mrf.mxu0
  %v271 = vadd.f32 0.0, %v270
  %272 = vdwg.mxu0
  %v273 = vadd.f32 %v250, %v271
  %v274 = vxor.u32 %v273, 2147483648
  %v275 = vmul.f32 %v274, 1.442695
  %v276 = vpow.pop %v275
  %v277 = vadd.f32 %v276, 1.0
  %v278 = vrcp.pop %v277
  %v279 = vmul.f32 %v277, %v278
  %v280 = vsub.f32 1.0, %v279
  %v281 = vmul.f32 %v278, %v280
  %v282 = vadd.f32 %v278, %v281
  %vm283 = vweird.f32 %v277
  %vm284 = vweird.f32 %v278
  %vm285 = vmor %vm283, %vm284
  %v286 = vsel %vm285, %v278, %v282
  %v287 = vand.u32 2147483647, %v277
  %vm288 = vcmp.eq.f32.partialorder %v287, 8.507059e+37
  %v289 = vand.u32 %v277, 2147483648
  %v290 = vor.u32 1.1754944e-38, %v289
  %v291 = vsel %vm288, %v290, %v286
  %v292 = vmul.f32 1.0, %v291
  %v293 = vtanh.pop %v273
  %v294 = vmul.f32 %v292, %v176
  %296 = vrot.lane.b32.xlu0 %v293, 80
  %v297 = vpop.permute.xlu0 %296
  %v299 = vmul.f32 %v292, %v297
  %301 = vrot.lane.b32.xlu0 %v299, 16
  %v302 = vpop.permute.xlu0 %301
  %v304 = vadd.f32 %v294, %v302
  %v305 = vtanh.pop %v304
  %307 = vrot.lane.b32.xlu0 %v305, 16
  %v308 = vpop.permute.xlu0 %307
  %v310 = vmul.f32 %v292, %v308
  %312 = vrot.lane.b32.xlu0 %v310, 96
  %v313 = vpop.permute.xlu0 %312
  %316 = vrot.lane.b32.xlu0 %v248, 112
  %v317 = vpop.permute.xlu0 %316
  %v319 = vsel %vm121, %v313, %v317
  %v321 = vsel %vm188, %v319, 0
  %323 = vmatpush.msra.mxu0 0.0
  %324 = vmatpush.msra.mxu0 0.0
  %325 = vmatpush.msra.mxu0 0.0
  %326 = vmatpush.msra.mxu0 0.0
  %327 = vmatpush.msra.mxu0 0.0
  %328 = vmatpush.msra.mxu0 0.0
  %329 = vmatpush.msra.mxu0 0.0
  %330 = vmatpush.msra.mxu0 0.0
  %331 = vmatpush.msra.mxu0 0.0
  %332 = vmatpush.msra.mxu0 0.0
  %333 = vmatpush.msra.mxu0 0.0
  %334 = vmatpush.msra.mxu0 0.0
  %335 = vmatpush.msra.mxu0 %v115
  %336 = vmatpush.msra.mxu0 %v114
  %337 = vmatpush.msra.mxu0 %v113
  %338 = vmatpush.msra.mxu0 %v112
  %339 = vmatmul.f32.gmra.mxu0 %v321
  %v340 = vpop.f32.mrf.mxu0
  %v341 = vadd.f32 %v118, %v340
  %342 = vdwg.mxu0
  %v343 = vxor.u32 %v341, 2147483648
  %v344 = vmul.f32 %v343, 1.442695
  %v345 = vpow.pop %v344
  %v346 = vadd.f32 %v345, 1.0
  %v347 = vrcp.pop %v346
  %v348 = vmul.f32 %v346, %v347
  %v349 = vsub.f32 1.0, %v348
  %v350 = vmul.f32 %v347, %v349
  %v351 = vadd.f32 %v347, %v350
  %vm352 = vweird.f32 %v346
  %vm353 = vweird.f32 %v347
  %vm354 = vmor %vm352, %vm353
  %v355 = vsel %vm354, %v347, %v351
  %v356 = vand.u32 2147483647, %v346
  %vm357 = vcmp.eq.f32.partialorder %v356, 8.507059e+37
  %v358 = vand.u32 %v346, 2147483648
  %v359 = vor.u32 1.1754944e-38, %v358
  %v360 = vsel %vm357, %v359, %v355
  %v361 = vmul.f32 1.0, %v360
  %v362 = vtanh.pop %v341
  %v363 = vmul.f32 %v361, %v242
  %365 = vrot.lane.b32.xlu0 %v362, 80
  %v366 = vpop.permute.xlu0 %365
  %v368 = vmul.f32 %v361, %v366
  %370 = vrot.lane.b32.xlu0 %v368, 16
  %v371 = vpop.permute.xlu0 %370
  %v373 = vadd.f32 %v363, %v371
  %v374 = vtanh.pop %v373
  %376 = vrot.lane.b32.xlu0 %v374, 16
  %v377 = vpop.permute.xlu0 %376
  %v379 = vmul.f32 %v361, %v377
  %s380 = scalar_lea.vmem [#allocation2], 16
  %v381 = vld [vmem:[%s380] sm:$0xff]
  %v382 = vsel %vm121, %v313, 0
  %384 = vmatpush.msra.mxu0 0.0
  %385 = vmatpush.msra.mxu0 0.0
  %386 = vmatpush.msra.mxu0 0.0
  %387 = vmatpush.msra.mxu0 0.0
  %388 = vmatpush.msra.mxu0 0.0
  %389 = vmatpush.msra.mxu0 0.0
  %390 = vmatpush.msra.mxu0 0.0
  %391 = vmatpush.msra.mxu0 0.0
  %392 = vmatpush.msra.mxu0 0.0
  %393 = vmatpush.msra.mxu0 0.0
  %394 = vmatpush.msra.mxu0 0.0
  %395 = vmatpush.msra.mxu0 0.0
  %396 = vmatpush.msra.mxu0 0.0
  %397 = vmatpush.msra.mxu0 0.0
  %398 = vmatpush.msra.mxu0 %v111
  %399 = vmatpush.msra.mxu0 %v110
  %400 = vmatmul.f32.gmra.mxu0 %v382
  %v401 = vpop.f32.mrf.mxu0
  %v402 = vadd.f32 0.0, %v401
  %403 = vdwg.mxu0
  %v404 = vadd.f32 %v381, %v402
  %v405 = vxor.u32 %v404, 2147483648
  %v406 = vmul.f32 %v405, 1.442695
  %v407 = vpow.pop %v406
  %v408 = vadd.f32 %v407, 1.0
  %v409 = vrcp.pop %v408
  %v410 = vmul.f32 %v408, %v409
  %v411 = vsub.f32 1.0, %v410
  %v412 = vmul.f32 %v409, %v411
  %v413 = vadd.f32 %v409, %v412
  %vm414 = vweird.f32 %v408
  %vm415 = vweird.f32 %v409
  %vm416 = vmor %vm414, %vm415
  %v417 = vsel %vm416, %v409, %v413
  %v418 = vand.u32 2147483647, %v408
  %vm419 = vcmp.eq.f32.partialorder %v418, 8.507059e+37
  %v420 = vand.u32 %v408, 2147483648
  %v421 = vor.u32 1.1754944e-38, %v420
  %v422 = vsel %vm419, %v421, %v417
  %v423 = vmul.f32 1.0, %v422
  %v424 = vtanh.pop %v404
  %v425 = vmul.f32 %v423, %v304
  %427 = vrot.lane.b32.xlu0 %v424, 80
  %v428 = vpop.permute.xlu0 %427
  %v430 = vmul.f32 %v423, %v428
  %432 = vrot.lane.b32.xlu0 %v430, 16
  %v433 = vpop.permute.xlu0 %432
  %v435 = vadd.f32 %v425, %v433
  %v436 = vtanh.pop %v435
  %438 = vrot.lane.b32.xlu0 %v436, 16
  %v439 = vpop.permute.xlu0 %438
  %v441 = vmul.f32 %v423, %v439
  %443 = vrot.lane.b32.xlu0 %v441, 96
  %v444 = vpop.permute.xlu0 %443
  %447 = vrot.lane.b32.xlu0 %v379, 112
  %v448 = vpop.permute.xlu0 %447
  %v450 = vsel %vm121, %v444, %v448
  %v452 = vsel %vm188, %v450, 0
  %454 = vmatpush.msra.mxu0 0.0
  %455 = vmatpush.msra.mxu0 0.0
  %456 = vmatpush.msra.mxu0 0.0
  %457 = vmatpush.msra.mxu0 0.0
  %458 = vmatpush.msra.mxu0 0.0
  %459 = vmatpush.msra.mxu0 0.0
  %460 = vmatpush.msra.mxu0 0.0
  %461 = vmatpush.msra.mxu0 0.0
  %462 = vmatpush.msra.mxu0 0.0
  %463 = vmatpush.msra.mxu0 0.0
  %464 = vmatpush.msra.mxu0 0.0
  %465 = vmatpush.msra.mxu0 0.0
  %466 = vmatpush.msra.mxu0 %v115
  %467 = vmatpush.msra.mxu0 %v114
  %468 = vmatpush.msra.mxu0 %v113
  %469 = vmatpush.msra.mxu0 %v112
  %470 = vmatmul.f32.gmra.mxu0 %v452
  %v471 = vpop.f32.mrf.mxu0
  %v472 = vadd.f32 %v118, %v471
  %473 = vdwg.mxu0
  %v474 = vxor.u32 %v472, 2147483648
  %v475 = vmul.f32 %v474, 1.442695
  %v476 = vpow.pop %v475
  %v477 = vadd.f32 %v476, 1.0
  %v478 = vrcp.pop %v477
  %v479 = vmul.f32 %v477, %v478
  %v480 = vsub.f32 1.0, %v479
  %v481 = vmul.f32 %v478, %v480
  %v482 = vadd.f32 %v478, %v481
  %vm483 = vweird.f32 %v477
  %vm484 = vweird.f32 %v478
  %vm485 = vmor %vm483, %vm484
  %v486 = vsel %vm485, %v478, %v482
  %v487 = vand.u32 2147483647, %v477
  %vm488 = vcmp.eq.f32.partialorder %v487, 8.507059e+37
  %v489 = vand.u32 %v477, 2147483648
  %v490 = vor.u32 1.1754944e-38, %v489
  %v491 = vsel %vm488, %v490, %v486
  %v492 = vmul.f32 1.0, %v491
  %v493 = vtanh.pop %v472
  %v494 = vmul.f32 %v492, %v373
  %496 = vrot.lane.b32.xlu0 %v493, 80
  %v497 = vpop.permute.xlu0 %496
  %v499 = vmul.f32 %v492, %v497
  %501 = vrot.lane.b32.xlu0 %v499, 16
  %v502 = vpop.permute.xlu0 %501
  %v504 = vadd.f32 %v494, %v502
  %v505 = vtanh.pop %v504
  %507 = vrot.lane.b32.xlu0 %v505, 16
  %v508 = vpop.permute.xlu0 %507
  %v510 = vmul.f32 %v492, %v508
  %s511 = scalar_lea.vmem [#allocation2], 24
  %v512 = vld [vmem:[%s511] sm:$0xff]
  %v513 = vsel %vm121, %v444, 0
  %515 = vmatpush.msra.mxu0 0.0
  %516 = vmatpush.msra.mxu0 0.0
  %517 = vmatpush.msra.mxu0 0.0
  %518 = vmatpush.msra.mxu0 0.0
  %519 = vmatpush.msra.mxu0 0.0
  %520 = vmatpush.msra.mxu0 0.0
  %521 = vmatpush.msra.mxu0 0.0
  %522 = vmatpush.msra.mxu0 0.0
  %523 = vmatpush.msra.mxu0 0.0
  %524 = vmatpush.msra.mxu0 0.0
  %525 = vmatpush.msra.mxu0 0.0
  %526 = vmatpush.msra.mxu0 0.0
  %527 = vmatpush.msra.mxu0 0.0
  %528 = vmatpush.msra.mxu0 0.0
  %529 = vmatpush.msra.mxu0 %v111
  %530 = vmatpush.msra.mxu0 %v110
  %531 = vmatmul.f32.gmra.mxu0 %v513
  %v532 = vpop.f32.mrf.mxu0
  %v533 = vadd.f32 0.0, %v532
  %534 = vdwg.mxu0
  %v535 = vadd.f32 %v512, %v533
  %v536 = vxor.u32 %v535, 2147483648
  %v537 = vmul.f32 %v536, 1.442695
  %v538 = vpow.pop %v537
  %v539 = vadd.f32 %v538, 1.0
  %v540 = vrcp.pop %v539
  %v541 = vmul.f32 %v539, %v540
  %v542 = vsub.f32 1.0, %v541
  %v543 = vmul.f32 %v540, %v542
  %v544 = vadd.f32 %v540, %v543
  %vm545 = vweird.f32 %v539
  %vm546 = vweird.f32 %v540
  %vm547 = vmor %vm545, %vm546
  %v548 = vsel %vm547, %v540, %v544
  %v549 = vand.u32 2147483647, %v539
  %vm550 = vcmp.eq.f32.partialorder %v549, 8.507059e+37
  %v551 = vand.u32 %v539, 2147483648
  %v552 = vor.u32 1.1754944e-38, %v551
  %v553 = vsel %vm550, %v552, %v548
  %v554 = vmul.f32 1.0, %v553
  %v555 = vtanh.pop %v535
  %v556 = vmul.f32 %v554, %v435
  %558 = vrot.lane.b32.xlu0 %v555, 80
  %v559 = vpop.permute.xlu0 %558
  %v561 = vmul.f32 %v554, %v559
  %563 = vrot.lane.b32.xlu0 %v561, 16
  %v564 = vpop.permute.xlu0 %563
  %v566 = vadd.f32 %v556, %v564
  %v567 = vtanh.pop %v566
  %569 = vrot.lane.b32.xlu0 %v567, 16
  %v570 = vpop.permute.xlu0 %569
  %v572 = vmul.f32 %v554, %v570
  %574 = vrot.lane.b32.xlu0 %v572, 96
  %v575 = vpop.permute.xlu0 %574
  %578 = vrot.lane.b32.xlu0 %v510, 112
  %v579 = vpop.permute.xlu0 %578
  %v581 = vsel %vm121, %v575, %v579
  %v583 = vsel %vm188, %v581, 0
  %585 = vmatpush.msra.mxu0 0.0
  %586 = vmatpush.msra.mxu0 0.0
  %587 = vmatpush.msra.mxu0 0.0
  %588 = vmatpush.msra.mxu0 0.0
  %589 = vmatpush.msra.mxu0 0.0
  %590 = vmatpush.msra.mxu0 0.0
  %591 = vmatpush.msra.mxu0 0.0
  %592 = vmatpush.msra.mxu0 0.0
  %593 = vmatpush.msra.mxu0 0.0
  %594 = vmatpush.msra.mxu0 0.0
  %595 = vmatpush.msra.mxu0 0.0
  %596 = vmatpush.msra.mxu0 0.0
  %597 = vmatpush.msra.mxu0 %v115
  %598 = vmatpush.msra.mxu0 %v114
  %599 = vmatpush.msra.mxu0 %v113
  %600 = vmatpush.msra.mxu0 %v112
  %601 = vmatmul.f32.gmra.mxu0 %v583
  %v602 = vpop.f32.mrf.mxu0
  %v603 = vadd.f32 %v118, %v602
  %604 = vdwg.mxu0
  %v605 = vxor.u32 %v603, 2147483648
  %v606 = vmul.f32 %v605, 1.442695
  %v607 = vpow.pop %v606
  %v608 = vadd.f32 %v607, 1.0
  %v609 = vrcp.pop %v608
  %v610 = vmul.f32 %v608, %v609
  %v611 = vsub.f32 1.0, %v610
  %v612 = vmul.f32 %v609, %v611
  %v613 = vadd.f32 %v609, %v612
  %vm614 = vweird.f32 %v608
  %vm615 = vweird.f32 %v609
  %vm616 = vmor %vm614, %vm615
  %v617 = vsel %vm616, %v609, %v613
  %v618 = vand.u32 2147483647, %v608
  %vm619 = vcmp.eq.f32.partialorder %v618, 8.507059e+37
  %v620 = vand.u32 %v608, 2147483648
  %v621 = vor.u32 1.1754944e-38, %v620
  %v622 = vsel %vm619, %v621, %v617
  %v623 = vmul.f32 1.0, %v622
  %v624 = vtanh.pop %v603
  %v625 = vmul.f32 %v623, %v504
  %627 = vrot.lane.b32.xlu0 %v624, 80
  %v628 = vpop.permute.xlu0 %627
  %v630 = vmul.f32 %v623, %v628
  %632 = vrot.lane.b32.xlu0 %v630, 16
  %v633 = vpop.permute.xlu0 %632
  %v635 = vadd.f32 %v625, %v633
  %v636 = vtanh.pop %v635
  %638 = vrot.lane.b32.xlu0 %v636, 16
  %v639 = vpop.permute.xlu0 %638
  %v641 = vmul.f32 %v623, %v639
  %s642 = scalar_lea.vmem [#allocation2], 32
  %v643 = vld [vmem:[%s642] sm:$0xff]
  %v644 = vsel %vm121, %v575, 0
  %646 = vmatpush.msra.mxu0 0.0
  %647 = vmatpush.msra.mxu0 0.0
  %648 = vmatpush.msra.mxu0 0.0
  %649 = vmatpush.msra.mxu0 0.0
  %650 = vmatpush.msra.mxu0 0.0
  %651 = vmatpush.msra.mxu0 0.0
  %652 = vmatpush.msra.mxu0 0.0
  %653 = vmatpush.msra.mxu0 0.0
  %654 = vmatpush.msra.mxu0 0.0
  %655 = vmatpush.msra.mxu0 0.0
  %656 = vmatpush.msra.mxu0 0.0
  %657 = vmatpush.msra.mxu0 0.0
  %658 = vmatpush.msra.mxu0 0.0
  %659 = vmatpush.msra.mxu0 0.0
  %660 = vmatpush.msra.mxu0 %v111
  %661 = vmatpush.msra.mxu0 %v110
  %662 = vmatmul.f32.gmra.mxu0 %v644
  %v663 = vpop.f32.mrf.mxu0
  %v664 = vadd.f32 0.0, %v663
  %665 = vdwg.mxu0
  %v666 = vadd.f32 %v643, %v664
  %v667 = vxor.u32 %v666, 2147483648
  %v668 = vmul.f32 %v667, 1.442695
  %v669 = vpow.pop %v668
  %v670 = vadd.f32 %v669, 1.0
  %v671 = vrcp.pop %v670
  %v672 = vmul.f32 %v670, %v671
  %v673 = vsub.f32 1.0, %v672
  %v674 = vmul.f32 %v671, %v673
  %v675 = vadd.f32 %v671, %v674
  %vm676 = vweird.f32 %v670
  %vm677 = vweird.f32 %v671
  %vm678 = vmor %vm676, %vm677
  %v679 = vsel %vm678, %v671, %v675
  %v680 = vand.u32 2147483647, %v670
  %vm681 = vcmp.eq.f32.partialorder %v680, 8.507059e+37
  %v682 = vand.u32 %v670, 2147483648
  %v683 = vor.u32 1.1754944e-38, %v682
  %v684 = vsel %vm681, %v683, %v679
  %v685 = vmul.f32 1.0, %v684
  %v686 = vtanh.pop %v666
  %v687 = vmul.f32 %v685, %v566
  %689 = vrot.lane.b32.xlu0 %v686, 80
  %v690 = vpop.permute.xlu0 %689
  %v692 = vmul.f32 %v685, %v690
  %694 = vrot.lane.b32.xlu0 %v692, 16
  %v695 = vpop.permute.xlu0 %694
  %v697 = vadd.f32 %v687, %v695
  %v698 = vtanh.pop %v697
  %700 = vrot.lane.b32.xlu0 %v698, 16
  %v701 = vpop.permute.xlu0 %700
  %v703 = vmul.f32 %v685, %v701
  %705 = vrot.lane.b32.xlu0 %v703, 96
  %v706 = vpop.permute.xlu0 %705
  %709 = vrot.lane.b32.xlu0 %v641, 112
  %v710 = vpop.permute.xlu0 %709
  %v712 = vsel %vm121, %v706, %v710
  %v714 = vsel %vm188, %v712, 0
  %716 = vmatpush.msra.mxu0 0.0
  %717 = vmatpush.msra.mxu0 0.0
  %718 = vmatpush.msra.mxu0 0.0
  %719 = vmatpush.msra.mxu0 0.0
  %720 = vmatpush.msra.mxu0 0.0
  %721 = vmatpush.msra.mxu0 0.0
  %722 = vmatpush.msra.mxu0 0.0
  %723 = vmatpush.msra.mxu0 0.0
  %724 = vmatpush.msra.mxu0 0.0
  %725 = vmatpush.msra.mxu0 0.0
  %726 = vmatpush.msra.mxu0 0.0
  %727 = vmatpush.msra.mxu0 0.0
  %728 = vmatpush.msra.mxu0 %v115
  %729 = vmatpush.msra.mxu0 %v114
  %730 = vmatpush.msra.mxu0 %v113
  %731 = vmatpush.msra.mxu0 %v112
  %732 = vmatmul.f32.gmra.mxu0 %v714
  %v733 = vpop.f32.mrf.mxu0
  %v734 = vadd.f32 %v118, %v733
  %735 = vdwg.mxu0
  %v736 = vxor.u32 %v734, 2147483648
  %v737 = vmul.f32 %v736, 1.442695
  %v738 = vpow.pop %v737
  %v739 = vadd.f32 %v738, 1.0
  %v740 = vrcp.pop %v739
  %v741 = vmul.f32 %v739, %v740
  %v742 = vsub.f32 1.0, %v741
  %v743 = vmul.f32 %v740, %v742
  %v744 = vadd.f32 %v740, %v743
  %vm745 = vweird.f32 %v739
  %vm746 = vweird.f32 %v740
  %vm747 = vmor %vm745, %vm746
  %v748 = vsel %vm747, %v740, %v744
  %v749 = vand.u32 2147483647, %v739
  %vm750 = vcmp.eq.f32.partialorder %v749, 8.507059e+37
  %v751 = vand.u32 %v739, 2147483648
  %v752 = vor.u32 1.1754944e-38, %v751
  %v753 = vsel %vm750, %v752, %v748
  %v754 = vmul.f32 1.0, %v753
  %v755 = vtanh.pop %v734
  %v756 = vmul.f32 %v754, %v635
  %758 = vrot.lane.b32.xlu0 %v755, 80
  %v759 = vpop.permute.xlu0 %758
  %v761 = vmul.f32 %v754, %v759
  %763 = vrot.lane.b32.xlu0 %v761, 16
  %v764 = vpop.permute.xlu0 %763
  %v766 = vadd.f32 %v756, %v764
  %v767 = vtanh.pop %v766
  %769 = vrot.lane.b32.xlu0 %v767, 16
  %v770 = vpop.permute.xlu0 %769
  %v772 = vmul.f32 %v754, %v770
  %s773 = scalar_lea.vmem [#allocation2], 40
  %v774 = vld [vmem:[%s773] sm:$0xff]
  %v775 = vsel %vm121, %v706, 0
  %777 = vmatpush.msra.mxu0 0.0
  %778 = vmatpush.msra.mxu0 0.0
  %779 = vmatpush.msra.mxu0 0.0
  %780 = vmatpush.msra.mxu0 0.0
  %781 = vmatpush.msra.mxu0 0.0
  %782 = vmatpush.msra.mxu0 0.0
  %783 = vmatpush.msra.mxu0 0.0
  %784 = vmatpush.msra.mxu0 0.0
  %785 = vmatpush.msra.mxu0 0.0
  %786 = vmatpush.msra.mxu0 0.0
  %787 = vmatpush.msra.mxu0 0.0
  %788 = vmatpush.msra.mxu0 0.0
  %789 = vmatpush.msra.mxu0 0.0
  %790 = vmatpush.msra.mxu0 0.0
  %791 = vmatpush.msra.mxu0 %v111
  %792 = vmatpush.msra.mxu0 %v110
  %793 = vmatmul.f32.gmra.mxu0 %v775
  %v794 = vpop.f32.mrf.mxu0
  %v795 = vadd.f32 0.0, %v794
  %796 = vdwg.mxu0
  %v797 = vadd.f32 %v774, %v795
  %v798 = vxor.u32 %v797, 2147483648
  %v799 = vmul.f32 %v798, 1.442695
  %v800 = vpow.pop %v799
  %v801 = vadd.f32 %v800, 1.0
  %v802 = vrcp.pop %v801
  %v803 = vmul.f32 %v801, %v802
  %v804 = vsub.f32 1.0, %v803
  %v805 = vmul.f32 %v802, %v804
  %v806 = vadd.f32 %v802, %v805
  %vm807 = vweird.f32 %v801
  %vm808 = vweird.f32 %v802
  %vm809 = vmor %vm807, %vm808
  %v810 = vsel %vm809, %v802, %v806
  %v811 = vand.u32 2147483647, %v801
  %vm812 = vcmp.eq.f32.partialorder %v811, 8.507059e+37
  %v813 = vand.u32 %v801, 2147483648
  %v814 = vor.u32 1.1754944e-38, %v813
  %v815 = vsel %vm812, %v814, %v810
  %v816 = vmul.f32 1.0, %v815
  %v817 = vtanh.pop %v797
  %v818 = vmul.f32 %v816, %v697
  %820 = vrot.lane.b32.xlu0 %v817, 80
  %v821 = vpop.permute.xlu0 %820
  %v823 = vmul.f32 %v816, %v821
  %825 = vrot.lane.b32.xlu0 %v823, 16
  %v826 = vpop.permute.xlu0 %825
  %v828 = vadd.f32 %v818, %v826
  %v829 = vtanh.pop %v828
  %831 = vrot.lane.b32.xlu0 %v829, 16
  %v832 = vpop.permute.xlu0 %831
  %v834 = vmul.f32 %v816, %v832
  %836 = vrot.lane.b32.xlu0 %v834, 96
  %v837 = vpop.permute.xlu0 %836
  %840 = vrot.lane.b32.xlu0 %v772, 112
  %v841 = vpop.permute.xlu0 %840
  %v843 = vsel %vm121, %v837, %v841
  %v845 = vsel %vm188, %v843, 0
  %847 = vmatpush.msra.mxu0 0.0
  %848 = vmatpush.msra.mxu0 0.0
  %849 = vmatpush.msra.mxu0 0.0
  %850 = vmatpush.msra.mxu0 0.0
  %851 = vmatpush.msra.mxu0 0.0
  %852 = vmatpush.msra.mxu0 0.0
  %853 = vmatpush.msra.mxu0 0.0
  %854 = vmatpush.msra.mxu0 0.0
  %855 = vmatpush.msra.mxu0 0.0
  %856 = vmatpush.msra.mxu0 0.0
  %857 = vmatpush.msra.mxu0 0.0
  %858 = vmatpush.msra.mxu0 0.0
  %859 = vmatpush.msra.mxu0 %v115
  %860 = vmatpush.msra.mxu0 %v114
  %861 = vmatpush.msra.mxu0 %v113
  %862 = vmatpush.msra.mxu0 %v112
  %863 = vmatmul.f32.gmra.mxu0 %v845
  %v864 = vpop.f32.mrf.mxu0
  %v865 = vadd.f32 %v118, %v864
  %866 = vdwg.mxu0
  %v867 = vxor.u32 %v865, 2147483648
  %v868 = vmul.f32 %v867, 1.442695
  %v869 = vpow.pop %v868
  %v870 = vadd.f32 %v869, 1.0
  %v871 = vrcp.pop %v870
  %v872 = vmul.f32 %v870, %v871
  %v873 = vsub.f32 1.0, %v872
  %v874 = vmul.f32 %v871, %v873
  %v875 = vadd.f32 %v871, %v874
  %vm876 = vweird.f32 %v870
  %vm877 = vweird.f32 %v871
  %vm878 = vmor %vm876, %vm877
  %v879 = vsel %vm878, %v871, %v875
  %v880 = vand.u32 2147483647, %v870
  %vm881 = vcmp.eq.f32.partialorder %v880, 8.507059e+37
  %v882 = vand.u32 %v870, 2147483648
  %v883 = vor.u32 1.1754944e-38, %v882
  %v884 = vsel %vm881, %v883, %v879
  %v885 = vmul.f32 1.0, %v884
  %v886 = vtanh.pop %v865
  %v887 = vmul.f32 %v885, %v766
  %889 = vrot.lane.b32.xlu0 %v886, 80
  %v890 = vpop.permute.xlu0 %889
  %v892 = vmul.f32 %v885, %v890
  %894 = vrot.lane.b32.xlu0 %v892, 16
  %v895 = vpop.permute.xlu0 %894
  %v897 = vadd.f32 %v887, %v895
  %v898 = vtanh.pop %v897
  %900 = vrot.lane.b32.xlu0 %v898, 16
  %v901 = vpop.permute.xlu0 %900
  %v903 = vmul.f32 %v885, %v901
  %s904 = scalar_lea.vmem [#allocation2], 48
  %v905 = vld [vmem:[%s904] sm:$0xff]
  %v906 = vsel %vm121, %v837, 0
  %908 = vmatpush.msra.mxu0 0.0
  %909 = vmatpush.msra.mxu0 0.0
  %910 = vmatpush.msra.mxu0 0.0
  %911 = vmatpush.msra.mxu0 0.0
  %912 = vmatpush.msra.mxu0 0.0
  %913 = vmatpush.msra.mxu0 0.0
  %914 = vmatpush.msra.mxu0 0.0
  %915 = vmatpush.msra.mxu0 0.0
  %916 = vmatpush.msra.mxu0 0.0
  %917 = vmatpush.msra.mxu0 0.0
  %918 = vmatpush.msra.mxu0 0.0
  %919 = vmatpush.msra.mxu0 0.0
  %920 = vmatpush.msra.mxu0 0.0
  %921 = vmatpush.msra.mxu0 0.0
  %922 = vmatpush.msra.mxu0 %v111
  %923 = vmatpush.msra.mxu0 %v110
  %924 = vmatmul.f32.gmra.mxu0 %v906
  %v925 = vpop.f32.mrf.mxu0
  %v926 = vadd.f32 0.0, %v925
  %927 = vdwg.mxu0
  %v928 = vadd.f32 %v905, %v926
  %v929 = vxor.u32 %v928, 2147483648
  %v930 = vmul.f32 %v929, 1.442695
  %v931 = vpow.pop %v930
  %v932 = vadd.f32 %v931, 1.0
  %v933 = vrcp.pop %v932
  %v934 = vmul.f32 %v932, %v933
  %v935 = vsub.f32 1.0, %v934
  %v936 = vmul.f32 %v933, %v935
  %v937 = vadd.f32 %v933, %v936
  %vm938 = vweird.f32 %v932
  %vm939 = vweird.f32 %v933
  %vm940 = vmor %vm938, %vm939
  %v941 = vsel %vm940, %v933, %v937
  %v942 = vand.u32 2147483647, %v932
  %vm943 = vcmp.eq.f32.partialorder %v942, 8.507059e+37
  %v944 = vand.u32 %v932, 2147483648
  %v945 = vor.u32 1.1754944e-38, %v944
  %v946 = vsel %vm943, %v945, %v941
  %v947 = vmul.f32 1.0, %v946
  %v948 = vtanh.pop %v928
  %v949 = vmul.f32 %v947, %v828
  %951 = vrot.lane.b32.xlu0 %v948, 80
  %v952 = vpop.permute.xlu0 %951
  %v954 = vmul.f32 %v947, %v952
  %956 = vrot.lane.b32.xlu0 %v954, 16
  %v957 = vpop.permute.xlu0 %956
  %v959 = vadd.f32 %v949, %v957
  %v960 = vtanh.pop %v959
  %962 = vrot.lane.b32.xlu0 %v960, 16
  %v963 = vpop.permute.xlu0 %962
  %v965 = vmul.f32 %v947, %v963
  %967 = vrot.lane.b32.xlu0 %v965, 96
  %v968 = vpop.permute.xlu0 %967
  %971 = vrot.lane.b32.xlu0 %v903, 112
  %v972 = vpop.permute.xlu0 %971
  %v974 = vsel %vm121, %v968, %v972
  %v976 = vsel %vm188, %v974, 0
  %978 = vmatpush.msra.mxu0 0.0
  %979 = vmatpush.msra.mxu0 0.0
  %980 = vmatpush.msra.mxu0 0.0
  %981 = vmatpush.msra.mxu0 0.0
  %982 = vmatpush.msra.mxu0 0.0
  %983 = vmatpush.msra.mxu0 0.0
  %984 = vmatpush.msra.mxu0 0.0
  %985 = vmatpush.msra.mxu0 0.0
  %986 = vmatpush.msra.mxu0 0.0
  %987 = vmatpush.msra.mxu0 0.0
  %988 = vmatpush.msra.mxu0 0.0
  %989 = vmatpush.msra.mxu0 0.0
  %990 = vmatpush.msra.mxu0 %v115
  %991 = vmatpush.msra.mxu0 %v114
  %992 = vmatpush.msra.mxu0 %v113
  %993 = vmatpush.msra.mxu0 %v112
  %994 = vmatmul.f32.gmra.mxu0 %v976
  %v995 = vpop.f32.mrf.mxu0
  %v996 = vadd.f32 %v118, %v995
  %997 = vdwg.mxu0
  %v998 = vxor.u32 %v996, 2147483648
  %v999 = vmul.f32 %v998, 1.442695
  %v1000 = vpow.pop %v999
  %v1001 = vadd.f32 %v1000, 1.0
  %v1002 = vrcp.pop %v1001
  %v1003 = vmul.f32 %v1001, %v1002
  %v1004 = vsub.f32 1.0, %v1003
  %v1005 = vmul.f32 %v1002, %v1004
  %v1006 = vadd.f32 %v1002, %v1005
  %vm1007 = vweird.f32 %v1001
  %vm1008 = vweird.f32 %v1002
  %vm1009 = vmor %vm1007, %vm1008
  %v1010 = vsel %vm1009, %v1002, %v1006
  %v1011 = vand.u32 2147483647, %v1001
  %vm1012 = vcmp.eq.f32.partialorder %v1011, 8.507059e+37
  %v1013 = vand.u32 %v1001, 2147483648
  %v1014 = vor.u32 1.1754944e-38, %v1013
  %v1015 = vsel %vm1012, %v1014, %v1010
  %v1016 = vmul.f32 1.0, %v1015
  %v1017 = vtanh.pop %v996
  %v1018 = vmul.f32 %v1016, %v897
  %1020 = vrot.lane.b32.xlu0 %v1017, 80
  %v1021 = vpop.permute.xlu0 %1020
  %v1023 = vmul.f32 %v1016, %v1021
  %1025 = vrot.lane.b32.xlu0 %v1023, 16
  %v1026 = vpop.permute.xlu0 %1025
  %v1028 = vadd.f32 %v1018, %v1026
  %v1029 = vtanh.pop %v1028
  %1031 = vrot.lane.b32.xlu0 %v1029, 16
  %v1032 = vpop.permute.xlu0 %1031
  %v1034 = vmul.f32 %v1016, %v1032
  %s1035 = scalar_lea.vmem [#allocation2], 56
  %v1036 = vld [vmem:[%s1035] sm:$0xff]
  %v1037 = vsel %vm121, %v968, 0
  %1039 = vmatpush.msra.mxu0 0.0
  %1040 = vmatpush.msra.mxu0 0.0
  %1041 = vmatpush.msra.mxu0 0.0
  %1042 = vmatpush.msra.mxu0 0.0
  %1043 = vmatpush.msra.mxu0 0.0
  %1044 = vmatpush.msra.mxu0 0.0
  %1045 = vmatpush.msra.mxu0 0.0
  %1046 = vmatpush.msra.mxu0 0.0
  %1047 = vmatpush.msra.mxu0 0.0
  %1048 = vmatpush.msra.mxu0 0.0
  %1049 = vmatpush.msra.mxu0 0.0
  %1050 = vmatpush.msra.mxu0 0.0
  %1051 = vmatpush.msra.mxu0 0.0
  %1052 = vmatpush.msra.mxu0 0.0
  %1053 = vmatpush.msra.mxu0 %v111
  %1054 = vmatpush.msra.mxu0 %v110
  %1055 = vmatmul.f32.gmra.mxu0 %v1037
  %v1056 = vpop.f32.mrf.mxu0
  %v1057 = vadd.f32 0.0, %v1056
  %1058 = vdwg.mxu0
  %v1059 = vadd.f32 %v1036, %v1057
  %v1060 = vxor.u32 %v1059, 2147483648
  %v1061 = vmul.f32 %v1060, 1.442695
  %v1062 = vpow.pop %v1061
  %v1063 = vadd.f32 %v1062, 1.0
  %v1064 = vrcp.pop %v1063
  %v1065 = vmul.f32 %v1063, %v1064
  %v1066 = vsub.f32 1.0, %v1065
  %v1067 = vmul.f32 %v1064, %v1066
  %v1068 = vadd.f32 %v1064, %v1067
  %vm1069 = vweird.f32 %v1063
  %vm1070 = vweird.f32 %v1064
  %vm1071 = vmor %vm1069, %vm1070
  %v1072 = vsel %vm1071, %v1064, %v1068
  %v1073 = vand.u32 2147483647, %v1063
  %vm1074 = vcmp.eq.f32.partialorder %v1073, 8.507059e+37
  %v1075 = vand.u32 %v1063, 2147483648
  %v1076 = vor.u32 1.1754944e-38, %v1075
  %v1077 = vsel %vm1074, %v1076, %v1072
  %v1078 = vmul.f32 1.0, %v1077
  %v1079 = vtanh.pop %v1059
  %v1080 = vmul.f32 %v1078, %v959
  %1082 = vrot.lane.b32.xlu0 %v1079, 80
  %v1083 = vpop.permute.xlu0 %1082
  %v1085 = vmul.f32 %v1078, %v1083
  %1087 = vrot.lane.b32.xlu0 %v1085, 16
  %v1088 = vpop.permute.xlu0 %1087
  %v1090 = vadd.f32 %v1080, %v1088
  %v1091 = vtanh.pop %v1090
  %1093 = vrot.lane.b32.xlu0 %v1091, 16
  %v1094 = vpop.permute.xlu0 %1093
  %v1096 = vmul.f32 %v1078, %v1094
  %1098 = vrot.lane.b32.xlu0 %v1096, 96
  %v1099 = vpop.permute.xlu0 %1098
  %1102 = vrot.lane.b32.xlu0 %v1034, 112
  %v1103 = vpop.permute.xlu0 %1102
  %v1105 = vsel %vm121, %v1099, %v1103
  %v1107 = vsel %vm188, %v1105, 0
  %1109 = vmatpush.msra.mxu0 0.0
  %1110 = vmatpush.msra.mxu0 0.0
  %1111 = vmatpush.msra.mxu0 0.0
  %1112 = vmatpush.msra.mxu0 0.0
  %1113 = vmatpush.msra.mxu0 0.0
  %1114 = vmatpush.msra.mxu0 0.0
  %1115 = vmatpush.msra.mxu0 0.0
  %1116 = vmatpush.msra.mxu0 0.0
  %1117 = vmatpush.msra.mxu0 0.0
  %1118 = vmatpush.msra.mxu0 0.0
  %1119 = vmatpush.msra.mxu0 0.0
  %1120 = vmatpush.msra.mxu0 0.0
  %1121 = vmatpush.msra.mxu0 %v115
  %1122 = vmatpush.msra.mxu0 %v114
  %1123 = vmatpush.msra.mxu0 %v113
  %1124 = vmatpush.msra.mxu0 %v112
  %1125 = vmatmul.f32.gmra.mxu0 %v1107
  %v1126 = vpop.f32.mrf.mxu0
  %v1127 = vadd.f32 %v118, %v1126
  %1128 = vdwg.mxu0
  %v1129 = vxor.u32 %v1127, 2147483648
  %v1130 = vmul.f32 %v1129, 1.442695
  %v1131 = vpow.pop %v1130
  %v1132 = vadd.f32 %v1131, 1.0
  %v1133 = vrcp.pop %v1132
  %v1134 = vmul.f32 %v1132, %v1133
  %v1135 = vsub.f32 1.0, %v1134
  %v1136 = vmul.f32 %v1133, %v1135
  %v1137 = vadd.f32 %v1133, %v1136
  %vm1138 = vweird.f32 %v1132
  %vm1139 = vweird.f32 %v1133
  %vm1140 = vmor %vm1138, %vm1139
  %v1141 = vsel %vm1140, %v1133, %v1137
  %v1142 = vand.u32 2147483647, %v1132
  %vm1143 = vcmp.eq.f32.partialorder %v1142, 8.507059e+37
  %v1144 = vand.u32 %v1132, 2147483648
  %v1145 = vor.u32 1.1754944e-38, %v1144
  %v1146 = vsel %vm1143, %v1145, %v1141
  %v1147 = vmul.f32 1.0, %v1146
  %v1148 = vtanh.pop %v1127
  %v1149 = vmul.f32 %v1147, %v1028
  %1151 = vrot.lane.b32.xlu0 %v1148, 80
  %v1152 = vpop.permute.xlu0 %1151
  %v1154 = vmul.f32 %v1147, %v1152
  %1156 = vrot.lane.b32.xlu0 %v1154, 16
  %v1157 = vpop.permute.xlu0 %1156
  %v1159 = vadd.f32 %v1149, %v1157
  %v1160 = vtanh.pop %v1159
  %1162 = vrot.lane.b32.xlu0 %v1160, 16
  %v1163 = vpop.permute.xlu0 %1162
  %v1165 = vmul.f32 %v1147, %v1163
  %v1166 = vld [vmem:[%s6] sm:$0xff]
  %v1167 = vld [vmem:[%s6 + $0x8] sm:$0xff]
  %v1168 = vld [vmem:[%s7] sm:$0x1]
  %v1170 = vperm.slane %v1168, 0
  %1173 = vrot.lane.b32.xlu0 %v1165, 96
  %v1174 = vpop.permute.xlu0 %1173
  %v1175 = vsel %vm121, %v1174, 0
  %1177 = vmatpush.msra.mxu0 0.0
  %1178 = vmatpush.msra.mxu0 0.0
  %1179 = vmatpush.msra.mxu0 0.0
  %1180 = vmatpush.msra.mxu0 0.0
  %1181 = vmatpush.msra.mxu0 0.0
  %1182 = vmatpush.msra.mxu0 0.0
  %1183 = vmatpush.msra.mxu0 0.0
  %1184 = vmatpush.msra.mxu0 0.0
  %1185 = vmatpush.msra.mxu0 0.0
  %1186 = vmatpush.msra.mxu0 0.0
  %1187 = vmatpush.msra.mxu0 0.0
  %1188 = vmatpush.msra.mxu0 0.0
  %1189 = vmatpush.msra.mxu0 0.0
  %1190 = vmatpush.msra.mxu0 0.0
  %1191 = vmatpush.msra.mxu0 %v1167
  %1192 = vmatpush.msra.mxu0 %v1166
  %1193 = vmatmul.f32.gmra.mxu0 %v1175
  %v1194 = vpop.f32.mrf.mxu0
  %v1195 = vadd.f32 %v1170, %v1194
  %1196 = vdwg.mxu0
  %1197 = vst [vmem:[%s8] sm:$0xff] %v1195
  // Predicated region
  $region34: #{lstm_model_forward.1} parent=0 // pred_check
    _
  $region35: #{lstm_model_forward.1} parent=0 // pred_check_branch
    %1199 = sbr.rel (0) target = $region37
  $region36: #{lstm_model_forward.1} parent=0 // pred_region
    _
  $region37: #{lstm_model_forward.1} parent=0 // pred_fallthru
    _
  // Predicated region
  $region38: #{lstm_model_forward.1} parent=0 // pred_check
    _
  $region39: #{lstm_model_forward.1} parent=0 // pred_check_branch
    %1201 = sbr.rel (0) target = $region41
  $region40: #{lstm_model_forward.1} parent=0 // pred_region
    _
  $region41: #{lstm_model_forward.1} parent=0 // pred_fallthru
    _

</llo_original>
